<compile_context>
chip_gen: v7x
topology: tpu7x:2x2x1
jax: 0.10.0
libtpu: 0.0.40
codegen_flags: <defaults>
</compile_context>

<pallas_src>
import jax
import jax.numpy as jnp
from jax import lax
from jax.experimental import pallas as pl
from jax.experimental.pallas import tpu as pltpu

NUM_FEA = 512
HIDDEN = 1024
IN_DIM = 10
BN_EPS = 1e-5     # nn.BatchNorm1d default eps
NORM_EPS = 1e-12  # F.normalize default eps


def _encoder_kernel(x_ref, w1_ref, p1_ref, w2_ref, p2_ref, out_ref):
    """One encoder per grid step.

    x_ref  : (B, IN_DIM)        f32
    w1_ref : (IN_DIM, HIDDEN)   bf16
    p1_ref : (3, HIDDEN)        f32   rows = [bias, gamma, beta]
    w2_ref : (HIDDEN, NUM_FEA)  bf16
    p2_ref : (3, NUM_FEA)       f32   rows = [bias, gamma, beta]
    out_ref: (B, NUM_FEA)       f32
    """
    inv_b = 1.0 / x_ref.shape[0]

    # ---- Linear(10 -> 1024): bf16 MXU matmul, f32 accumulate ----
    x = x_ref[...].astype(jnp.bfloat16)
    z1 = jnp.dot(x, w1_ref[...], preferred_element_type=jnp.float32)
    z1 = z1 + p1_ref[0:1, :]

    # ---- BatchNorm1d(1024), training mode: one-pass stats, folded affine ----
    mean1 = jnp.sum(z1, axis=0, keepdims=True) * inv_b
    ez2_1 = jnp.sum(z1 * z1, axis=0, keepdims=True) * inv_b
    var1 = jnp.maximum(ez2_1 - mean1 * mean1, 0.0)          # biased variance
    scale1 = p1_ref[1:2, :] * lax.rsqrt(var1 + BN_EPS)       # gamma / std
    shift1 = p1_ref[2:3, :] - mean1 * scale1                 # beta - mean*scale
    h1 = jnp.maximum(z1 * scale1 + shift1, 0.0)              # BN + ReLU fused

    # ---- Linear(1024 -> 512): bf16 MXU matmul, f32 accumulate ----
    z2 = jnp.dot(h1.astype(jnp.bfloat16), w2_ref[...],
                 preferred_element_type=jnp.float32)
    z2 = z2 + p2_ref[0:1, :]

    # ---- BatchNorm1d(512), training mode + ReLU ----
    mean2 = jnp.sum(z2, axis=0, keepdims=True) * inv_b
    ez2_2 = jnp.sum(z2 * z2, axis=0, keepdims=True) * inv_b
    var2 = jnp.maximum(ez2_2 - mean2 * mean2, 0.0)
    scale2 = p2_ref[1:2, :] * lax.rsqrt(var2 + BN_EPS)
    shift2 = p2_ref[2:3, :] - mean2 * scale2
    h2 = jnp.maximum(z2 * scale2 + shift2, 0.0)

    # ---- F.normalize(dim=1): rsqrt on EUP instead of sqrt + divide ----
    sumsq = jnp.sum(h2 * h2, axis=1, keepdims=True)
    out_ref[...] = h2 * lax.rsqrt(jnp.maximum(sumsq, NORM_EPS * NORM_EPS))


def sure_fc_reuters_forward(x0, x1, params):
    """Equivalent of SUREfcReuters.forward: returns (h0, h1), each (B, 512).

    params holds the two encoders' weights stacked on a leading axis of 2:
      w1: (2, IN_DIM, HIDDEN)  bf16     p1: (2, 3, HIDDEN)  f32
      w2: (2, HIDDEN, NUM_FEA) bf16     p2: (2, 3, NUM_FEA) f32
    """
    B = x0.shape[0]
    # x.view(B, -1) then stack the two views along the encoder axis.
    x = jnp.stack(
        [x0.reshape(B, -1).astype(jnp.float32),
         x1.reshape(x1.shape[0], -1).astype(jnp.float32)], axis=0)

    in_specs = [
        pl.BlockSpec((None, B, IN_DIM), lambda e: (e, 0, 0)),
        pl.BlockSpec((None, IN_DIM, HIDDEN), lambda e: (e, 0, 0)),
        pl.BlockSpec((None, 3, HIDDEN), lambda e: (e, 0, 0)),
        pl.BlockSpec((None, HIDDEN, NUM_FEA), lambda e: (e, 0, 0)),
        pl.BlockSpec((None, 3, NUM_FEA), lambda e: (e, 0, 0)),
    ]
    out_spec = pl.BlockSpec((None, B, NUM_FEA), lambda e: (e, 0, 0))

    h = pl.pallas_call(
        _encoder_kernel,
        out_shape=jax.ShapeDtypeStruct((2, B, NUM_FEA), jnp.float32),
        grid=(2,),
        in_specs=in_specs,
        out_specs=out_spec,
        compiler_params=pltpu.CompilerParams(
            dimension_semantics=("parallel",)),  # 2 TCs on v7x; no-op on v5e/v6e
    )(x, params["w1"], params["p1"], params["w2"], params["p2"])
    return h[0], h[1]


def init_params(key):
    """Deterministic synthetic init matching PyTorch layer shapes.

    PyTorch Linear weight is (out, in); stored here as (in, out) in bf16.
    BatchNorm1d default init: weight (gamma) = 1, bias (beta) = 0.
    Per layer, [bias, gamma, beta] are packed into one (3, N) f32 buffer.
    """
    ks = jax.random.split(key, 8)

    def linear(kw, kb, fan_in, fan_out):
        bound = fan_in ** -0.5
        w = jax.random.uniform(kw, (fan_in, fan_out), jnp.float32, -bound, bound)
        b = jax.random.uniform(kb, (fan_out,), jnp.float32, -bound, bound)
        return w, b

    def encoder(k4):
        w1, b1 = linear(k4[0], k4[1], IN_DIM, HIDDEN)
        w2, b2 = linear(k4[2], k4[3], HIDDEN, NUM_FEA)
        g1 = jnp.ones((HIDDEN,), jnp.float32)
        be1 = jnp.zeros((HIDDEN,), jnp.float32)
        g2 = jnp.ones((NUM_FEA,), jnp.float32)
        be2 = jnp.zeros((NUM_FEA,), jnp.float32)
        p1 = jnp.stack([b1, g1, be1])   # (3, HIDDEN)
        p2 = jnp.stack([b2, g2, be2])   # (3, NUM_FEA)
        return w1.astype(jnp.bfloat16), p1, w2.astype(jnp.bfloat16), p2

    e0 = encoder(ks[:4])
    e1 = encoder(ks[4:])
    return dict(
        w1=jnp.stack([e0[0], e1[0]]),   # (2, IN_DIM, HIDDEN)  bf16
        p1=jnp.stack([e0[1], e1[1]]),   # (2, 3, HIDDEN)       f32
        w2=jnp.stack([e0[2], e1[2]]),   # (2, HIDDEN, NUM_FEA) bf16
        p2=jnp.stack([e0[3], e1[3]]),   # (2, 3, NUM_FEA)      f32
    )


# ---------------------------------------------------------------------------
# Pure-JAX references for sanity checks.
# ---------------------------------------------------------------------------
def _ref_encoder(x, w1, p1, w2, p2, *, bf16_matmul):
    """PyTorch-semantics reference.  bf16_matmul=True mirrors the kernel's
    precision choices (bf16 matmul inputs, f32 accumulation/statistics)."""
    b1, g1, be1 = p1[0], p1[1], p1[2]
    b2, g2, be2 = p2[0], p2[1], p2[2]
    if bf16_matmul:
        mm1 = lambda a: jnp.dot(a.astype(jnp.bfloat16), w1,
                                preferred_element_type=jnp.float32)
        mm2 = lambda a: jnp.dot(a.astype(jnp.bfloat16), w2,
                                preferred_element_type=jnp.float32)
    else:
        mm1 = lambda a: jnp.dot(a, w1.astype(jnp.float32))
        mm2 = lambda a: jnp.dot(a, w2.astype(jnp.float32))

    z1 = mm1(x) + b1
    m1 = z1.mean(0)
    v1 = ((z1 - m1) ** 2).mean(0)
    h1 = jnp.maximum((z1 - m1) / jnp.sqrt(v1 + BN_EPS) * g1 + be1, 0.0)
    z2 = mm2(h1) + b2
    m2 = z2.mean(0)
    v2 = ((z2 - m2) ** 2).mean(0)
    h2 = jnp.maximum((z2 - m2) / jnp.sqrt(v2 + BN_EPS) * g2 + be2, 0.0)
    n = jnp.sqrt((h2 * h2).sum(1, keepdims=True))
    return h2 / jnp.maximum(n, NORM_EPS)


if __name__ == "__main__":
    key = jax.random.PRNGKey(0)
    kp, kx0, kx1 = jax.random.split(key, 3)

    B = 8  # BatchNorm (training mode) needs the whole batch in one block
    x0 = jax.random.normal(kx0, (B, IN_DIM), jnp.float32)
    x1 = jax.random.normal(kx1, (B, IN_DIM), jnp.float32)
    params = init_params(kp)

    h0, h1 = sure_fc_reuters_forward(x0, x1, params)
    jax.block_until_ready((h0, h1))
    assert h0.shape == (B, NUM_FEA) and h1.shape == (B, NUM_FEA)

    # (1) Tight check against a reference using the same bf16/f32 precision.
    r0 = _ref_encoder(x0, params["w1"][0], params["p1"][0],
                      params["w2"][0], params["p2"][0], bf16_matmul=True)
    r1 = _ref_encoder(x1, params["w1"][1], params["p1"][1],
                      params["w2"][1], params["p2"][1], bf16_matmul=True)
    assert jnp.allclose(h0, r0, atol=2e-3, rtol=2e-3)
    assert jnp.allclose(h1, r1, atol=2e-3, rtol=2e-3)

    # (2) Semantic check against a full-f32 PyTorch-style reference
    #     (bf16 weights deviate only at the ~1e-3 level after L2-normalize).
    f0 = _ref_encoder(x0, params["w1"][0], params["p1"][0],
                      params["w2"][0], params["p2"][0], bf16_matmul=False)
    f1 = _ref_encoder(x1, params["w1"][1], params["p1"][1],
                      params["w2"][1], params["p2"][1], bf16_matmul=False)
    assert float(jnp.max(jnp.abs(h0 - f0))) < 2e-2
    assert float(jnp.max(jnp.abs(h1 - f1))) < 2e-2

    print("KERNEL_OK")
</pallas_src>

<mosaic_0001>
module attributes {stable_mosaic.version = 11 : i64} {
  func.func @_encoder_kernel(%arg0: i32, %arg1: memref<1x8x10xf32, #tpu.memory_space<vmem>>, %arg2: memref<1x10x1024xbf16, #tpu.memory_space<vmem>>, %arg3: memref<1x3x1024xf32, #tpu.memory_space<vmem>>, %arg4: memref<1x1024x512xbf16, #tpu.memory_space<vmem>>, %arg5: memref<1x3x512xf32, #tpu.memory_space<vmem>>, %arg6: memref<1x8x512xf32, #tpu.memory_space<vmem>>) attributes {dimension_semantics = [#tpu.dimension_semantics<parallel>], iteration_bounds = array<i64: 2>, scalar_prefetch = 0 : i64, scratch_operands = 0 : i64, tpu.core_type = #tpu.core_type<tc>, window_params = [{transform_indices = @transform_0, window_bounds = array<i64: 1, 8, 10>}, {transform_indices = @transform_1, window_bounds = array<i64: 1, 10, 1024>}, {transform_indices = @transform_2, window_bounds = array<i64: 1, 3, 1024>}, {transform_indices = @transform_3, window_bounds = array<i64: 1, 1024, 512>}, {transform_indices = @transform_4, window_bounds = array<i64: 1, 3, 512>}, {transform_indices = @transform_5, window_bounds = array<i64: 1, 8, 512>}]} {
    %c0 = arith.constant 0 : index
    %c0_0 = arith.constant 0 : index
    %c0_1 = arith.constant 0 : index
    %0 = vector.load %arg1[%c0, %c0_0, %c0_1] : memref<1x8x10xf32, #tpu.memory_space<vmem>>, vector<1x8x10xf32>
    %1 = vector.shape_cast %0 : vector<1x8x10xf32> to vector<8x10xf32>
    %2 = arith.truncf %1 : vector<8x10xf32> to vector<8x10xbf16>
    %c0_2 = arith.constant 0 : index
    %c0_3 = arith.constant 0 : index
    %c0_4 = arith.constant 0 : index
    %3 = vector.load %arg2[%c0_2, %c0_3, %c0_4] : memref<1x10x1024xbf16, #tpu.memory_space<vmem>>, vector<1x10x1024xbf16>
    %4 = vector.shape_cast %3 : vector<1x10x1024xbf16> to vector<10x1024xbf16>
    %cst = arith.constant dense<0.000000e+00> : vector<8x1024xf32>
    %5 = tpu.matmul %2, %4, %cst {dimension_numbers = #tpu.dot_dimension_numbers<[1], [0], [0], [1], [0, 0, 1, 1], [], []>} : vector<8x10xbf16>, vector<10x1024xbf16>, vector<8x1024xf32> -> vector<8x1024xf32>
    %c0_5 = arith.constant 0 : index
    %c0_6 = arith.constant 0 : index
    %c0_7 = arith.constant 0 : index
    %6 = vector.load %arg3[%c0_5, %c0_6, %c0_7] : memref<1x3x1024xf32, #tpu.memory_space<vmem>>, vector<1x1x1024xf32>
    %7 = vector.shape_cast %6 : vector<1x1x1024xf32> to vector<1x1024xf32>
    %8 = vector.broadcast %7 : vector<1x1024xf32> to vector<8x1024xf32>
    %9 = arith.addf %5, %8 : vector<8x1024xf32>
    %cst_8 = arith.constant dense<0.000000e+00> : vector<1024xf32>
    %10 = vector.multi_reduction <add>, %9, %cst_8 [0] : vector<8x1024xf32> to vector<1024xf32>
    %11 = vector.shape_cast %10 : vector<1024xf32> to vector<1x1024xf32>
    %cst_9 = arith.constant 1.250000e-01 : f32
    %12 = vector.broadcast %cst_9 : f32 to vector<1x1024xf32>
    %13 = arith.mulf %11, %12 : vector<1x1024xf32>
    %14 = arith.mulf %9, %9 : vector<8x1024xf32>
    %cst_10 = arith.constant dense<0.000000e+00> : vector<1024xf32>
    %15 = vector.multi_reduction <add>, %14, %cst_10 [0] : vector<8x1024xf32> to vector<1024xf32>
    %16 = vector.shape_cast %15 : vector<1024xf32> to vector<1x1024xf32>
    %cst_11 = arith.constant 1.250000e-01 : f32
    %17 = vector.broadcast %cst_11 : f32 to vector<1x1024xf32>
    %18 = arith.mulf %16, %17 : vector<1x1024xf32>
    %19 = arith.mulf %13, %13 : vector<1x1024xf32>
    %20 = arith.subf %18, %19 : vector<1x1024xf32>
    %cst_12 = arith.constant 0.000000e+00 : f32
    %21 = vector.broadcast %cst_12 : f32 to vector<1x1024xf32>
    %22 = arith.maximumf %20, %21 : vector<1x1024xf32>
    %c0_13 = arith.constant 0 : index
    %c1 = arith.constant 1 : index
    %c0_14 = arith.constant 0 : index
    %23 = vector.load %arg3[%c0_13, %c1, %c0_14] : memref<1x3x1024xf32, #tpu.memory_space<vmem>>, vector<1x1x1024xf32>
    %24 = vector.shape_cast %23 : vector<1x1x1024xf32> to vector<1x1024xf32>
    %cst_15 = arith.constant 9.99999974E-6 : f32
    %25 = vector.broadcast %cst_15 : f32 to vector<1x1024xf32>
    %26 = arith.addf %22, %25 : vector<1x1024xf32>
    %27 = math.rsqrt %26 : vector<1x1024xf32>
    %28 = arith.mulf %24, %27 : vector<1x1024xf32>
    %c0_16 = arith.constant 0 : index
    %c2 = arith.constant 2 : index
    %c0_17 = arith.constant 0 : index
    %29 = vector.load %arg3[%c0_16, %c2, %c0_17] : memref<1x3x1024xf32, #tpu.memory_space<vmem>>, vector<1x1x1024xf32>
    %30 = vector.shape_cast %29 : vector<1x1x1024xf32> to vector<1x1024xf32>
    %31 = arith.mulf %13, %28 : vector<1x1024xf32>
    %32 = arith.subf %30, %31 : vector<1x1024xf32>
    %33 = vector.broadcast %28 : vector<1x1024xf32> to vector<8x1024xf32>
    %34 = arith.mulf %9, %33 : vector<8x1024xf32>
    %35 = vector.broadcast %32 : vector<1x1024xf32> to vector<8x1024xf32>
    %36 = arith.addf %34, %35 : vector<8x1024xf32>
    %cst_18 = arith.constant 0.000000e+00 : f32
    %37 = vector.broadcast %cst_18 : f32 to vector<8x1024xf32>
    %38 = arith.maximumf %36, %37 : vector<8x1024xf32>
    %39 = arith.truncf %38 : vector<8x1024xf32> to vector<8x1024xbf16>
    %c0_19 = arith.constant 0 : index
    %c0_20 = arith.constant 0 : index
    %c0_21 = arith.constant 0 : index
    %40 = vector.load %arg4[%c0_19, %c0_20, %c0_21] : memref<1x1024x512xbf16, #tpu.memory_space<vmem>>, vector<1x1024x512xbf16>
    %41 = vector.shape_cast %40 : vector<1x1024x512xbf16> to vector<1024x512xbf16>
    %cst_22 = arith.constant dense<0.000000e+00> : vector<8x512xf32>
    %42 = tpu.matmul %39, %41, %cst_22 {dimension_numbers = #tpu.dot_dimension_numbers<[1], [0], [0], [1], [0, 0, 1, 1], [], []>} : vector<8x1024xbf16>, vector<1024x512xbf16>, vector<8x512xf32> -> vector<8x512xf32>
    %c0_23 = arith.constant 0 : index
    %c0_24 = arith.constant 0 : index
    %c0_25 = arith.constant 0 : index
    %43 = vector.load %arg5[%c0_23, %c0_24, %c0_25] : memref<1x3x512xf32, #tpu.memory_space<vmem>>, vector<1x1x512xf32>
    %44 = vector.shape_cast %43 : vector<1x1x512xf32> to vector<1x512xf32>
    %45 = vector.broadcast %44 : vector<1x512xf32> to vector<8x512xf32>
    %46 = arith.addf %42, %45 : vector<8x512xf32>
    %cst_26 = arith.constant dense<0.000000e+00> : vector<512xf32>
    %47 = vector.multi_reduction <add>, %46, %cst_26 [0] : vector<8x512xf32> to vector<512xf32>
    %48 = vector.shape_cast %47 : vector<512xf32> to vector<1x512xf32>
    %cst_27 = arith.constant 1.250000e-01 : f32
    %49 = vector.broadcast %cst_27 : f32 to vector<1x512xf32>
    %50 = arith.mulf %48, %49 : vector<1x512xf32>
    %51 = arith.mulf %46, %46 : vector<8x512xf32>
    %cst_28 = arith.constant dense<0.000000e+00> : vector<512xf32>
    %52 = vector.multi_reduction <add>, %51, %cst_28 [0] : vector<8x512xf32> to vector<512xf32>
    %53 = vector.shape_cast %52 : vector<512xf32> to vector<1x512xf32>
    %cst_29 = arith.constant 1.250000e-01 : f32
    %54 = vector.broadcast %cst_29 : f32 to vector<1x512xf32>
    %55 = arith.mulf %53, %54 : vector<1x512xf32>
    %56 = arith.mulf %50, %50 : vector<1x512xf32>
    %57 = arith.subf %55, %56 : vector<1x512xf32>
    %cst_30 = arith.constant 0.000000e+00 : f32
    %58 = vector.broadcast %cst_30 : f32 to vector<1x512xf32>
    %59 = arith.maximumf %57, %58 : vector<1x512xf32>
    %c0_31 = arith.constant 0 : index
    %c1_32 = arith.constant 1 : index
    %c0_33 = arith.constant 0 : index
    %60 = vector.load %arg5[%c0_31, %c1_32, %c0_33] : memref<1x3x512xf32, #tpu.memory_space<vmem>>, vector<1x1x512xf32>
    %61 = vector.shape_cast %60 : vector<1x1x512xf32> to vector<1x512xf32>
    %cst_34 = arith.constant 9.99999974E-6 : f32
    %62 = vector.broadcast %cst_34 : f32 to vector<1x512xf32>
    %63 = arith.addf %59, %62 : vector<1x512xf32>
    %64 = math.rsqrt %63 : vector<1x512xf32>
    %65 = arith.mulf %61, %64 : vector<1x512xf32>
    %c0_35 = arith.constant 0 : index
    %c2_36 = arith.constant 2 : index
    %c0_37 = arith.constant 0 : index
    %66 = vector.load %arg5[%c0_35, %c2_36, %c0_37] : memref<1x3x512xf32, #tpu.memory_space<vmem>>, vector<1x1x512xf32>
    %67 = vector.shape_cast %66 : vector<1x1x512xf32> to vector<1x512xf32>
    %68 = arith.mulf %50, %65 : vector<1x512xf32>
    %69 = arith.subf %67, %68 : vector<1x512xf32>
    %70 = vector.broadcast %65 : vector<1x512xf32> to vector<8x512xf32>
    %71 = arith.mulf %46, %70 : vector<8x512xf32>
    %72 = vector.broadcast %69 : vector<1x512xf32> to vector<8x512xf32>
    %73 = arith.addf %71, %72 : vector<8x512xf32>
    %cst_38 = arith.constant 0.000000e+00 : f32
    %74 = vector.broadcast %cst_38 : f32 to vector<8x512xf32>
    %75 = arith.maximumf %73, %74 : vector<8x512xf32>
    %76 = arith.mulf %75, %75 : vector<8x512xf32>
    %cst_39 = arith.constant dense<0.000000e+00> : vector<8xf32>
    %77 = vector.multi_reduction <add>, %76, %cst_39 [1] : vector<8x512xf32> to vector<8xf32>
    %78 = vector.shape_cast %77 : vector<8xf32> to vector<8x1xf32>
    %cst_40 = arith.constant 1.000000e-24 : f32
    %79 = vector.broadcast %cst_40 : f32 to vector<8x1xf32>
    %80 = arith.maximumf %78, %79 : vector<8x1xf32>
    %81 = math.rsqrt %80 : vector<8x1xf32>
    %82 = vector.broadcast %81 : vector<8x1xf32> to vector<8x512xf32>
    %83 = arith.mulf %75, %82 : vector<8x512xf32>
    %c0_41 = arith.constant 0 : index
    %c0_42 = arith.constant 0 : index
    %c0_43 = arith.constant 0 : index
    %84 = vector.load %arg6[%c0_41, %c0_42, %c0_43] : memref<1x8x512xf32, #tpu.memory_space<vmem>>, vector<1x8x512xf32>
    %85 = vector.shape_cast %84 : vector<1x8x512xf32> to vector<8x512xf32>
    %86 = vector.shape_cast %83 : vector<8x512xf32> to vector<1x8x512xf32>
    tpu.vector_store %arg6[%c0_41, %c0_42, %c0_43], %86 {strides = array<i32>} : memref<1x8x512xf32, #tpu.memory_space<vmem>>, vector<1x8x512xf32>,
    return
  }
  func.func @transform_0(%arg0: i32) -> (i32, i32, i32) {
    %c0_i32 = arith.constant 0 : i32
    %c0_i32_0 = arith.constant 0 : i32
    %c0_i32_1 = arith.constant 0 : i32
    return %arg0, %c0_i32, %c0_i32_0 : i32, i32, i32
  }
  func.func @transform_1(%arg0: i32) -> (i32, i32, i32) {
    %c0_i32 = arith.constant 0 : i32
    %c0_i32_0 = arith.constant 0 : i32
    %c0_i32_1 = arith.constant 0 : i32
    return %arg0, %c0_i32, %c0_i32_0 : i32, i32, i32
  }
  func.func @transform_2(%arg0: i32) -> (i32, i32, i32) {
    %c0_i32 = arith.constant 0 : i32
    %c0_i32_0 = arith.constant 0 : i32
    %c0_i32_1 = arith.constant 0 : i32
    return %arg0, %c0_i32, %c0_i32_0 : i32, i32, i32
  }
  func.func @transform_3(%arg0: i32) -> (i32, i32, i32) {
    %c0_i32 = arith.constant 0 : i32
    %c0_i32_0 = arith.constant 0 : i32
    %c0_i32_1 = arith.constant 0 : i32
    return %arg0, %c0_i32, %c0_i32_0 : i32, i32, i32
  }
  func.func @transform_4(%arg0: i32) -> (i32, i32, i32) {
    %c0_i32 = arith.constant 0 : i32
    %c0_i32_0 = arith.constant 0 : i32
    %c0_i32_1 = arith.constant 0 : i32
    return %arg0, %c0_i32, %c0_i32_0 : i32, i32, i32
  }
  func.func @transform_5(%arg0: i32) -> (i32, i32, i32) {
    %c0_i32 = arith.constant 0 : i32
    %c0_i32_0 = arith.constant 0 : i32
    %c0_i32_1 = arith.constant 0 : i32
    return %arg0, %c0_i32, %c0_i32_0 : i32, i32, i32
  }
}

</mosaic_0001>

<llo_original>
// kernel: tpu_custom_call.1
$region0: #{tpu_custom_call.1}
  #allocation0 [shape = 'u32[]', space=smem, size = 0x4, offset = 0x4, fixed_abs, tag = 'smem constant byte address 0x4 - core index']
  #allocation1 [shape = 'u32[144,128]{1,0:T(1,128)}', space=vmem, size = 0x12000, scoped, tag = 'internal scratch']
  %s0 = inlined_call_operand.hbm [shape: f32[2,8,10], index: 0, kind: input, shape index: {}]
  %s1 = inlined_call_operand.vmem [shape: bf16[2,10,1024], index: 1, kind: input, shape index: {}]
  %s2 = inlined_call_operand.vmem [shape: f32[2,3,1024], index: 2, kind: input, shape index: {}]
  %s3 = inlined_call_operand.hbm [shape: bf16[2,1024,512], index: 3, kind: input, shape index: {}]
  %s4 = inlined_call_operand.vmem [shape: f32[2,3,512], index: 4, kind: input, shape index: {}]
  %s5 = inlined_call_operand.hbm [shape: f32[2,8,512], index: 5, kind: output, shape index: {}]
  %s6 = sld [smem:[#allocation0]]
  $region61: #{tpu_custom_call.1} parent=0
    _
  %s8 = ssub.s32 1, %s6
  %s9 = scalar_select 0, %s8, %s6
  $region1: #{tpu_custom_call.1} parent=0
    #allocation2 [shape = 'u8[8192]{0}', space=vmem, size = 0x2000, scoped, tag = 'input window, operand 0']
    #allocation3 [shape = 's32[2]{0}', space=sflag, size = 0x8, scoped, tag = 'scoped memory for tpu_custom_call.1']
    #allocation4 [shape = 's32[2]{0}', space=sflag, size = 0x8, scoped, tag = 'scoped memory for tpu_custom_call.1']
    #allocation5 [shape = 'u8[2097152]{0}', space=vmem, size = 0x200000, scoped, tag = 'input window, operand 3']
    #allocation6 [shape = 's32[2]{0}', space=sflag, size = 0x8, scoped, tag = 'scoped memory for tpu_custom_call.1']
    #allocation7 [shape = 'u8[32768]{0}', space=vmem, size = 0x8000, scoped, tag = 'output window, operand 0']
    %10 = vsyncpa [#allocation3], 0
    %s11 = scalar_lea.sflag [#allocation3], 1
    %12 = vsyncpa %s11, 0
    %13 = vsyncpa [#allocation6], 0
    %s14 = scalar_lea.sflag [#allocation6], 1
    %15 = vsyncpa %s14, 0
    %16 = vsyncpa [#allocation4], 0
    %s17 = scalar_lea.sflag [#allocation4], 1
    %18 = vsyncpa %s17, 0
    loop: start=0, step=1, limit=4
    $region2: #{tpu_custom_call.1} parent=1 // loop_pre_header
      _
    $region3: #{tpu_custom_call.1} parent=1 // loop_header
      %s20 = sphi 0, %s24
      %p21 = scmp.ge.s32.totalorder %s20, 4
      %s30 = sphi 0, %s32
      %s33 = sphi 0, %s30
      %s34 = sphi 0, %s33
      %s50 = sphi 0, %s34
      %s56 = sphi 0, %s58
      %s59 = sphi 0, %s56
      %s60 = sphi 0, %s59
      %s76 = sphi 0, %s60
      %s82 = sphi 0, %s84
      %s85 = sphi 0, %s82
      %s86 = sphi 0, %s85
      %s102 = sphi 0, %s86
      %s108 = sphi 0, %s110
      %s111 = sphi 0, %s108
      %s112 = sphi 0, %s111
      %s128 = sphi 0, %s112
      %s134 = sphi 0, %s136
      %s137 = sphi 0, %s134
      %s138 = sphi 0, %s137
      %s154 = sphi 0, %s138
      %s160 = sphi 0, %s162
      %s163 = sphi 0, %s160
      %s164 = sphi 0, %s163
      %s180 = sphi 0, %s164
    $region4: #{tpu_custom_call.1} parent=1 // loop_header_branch
      %23 = sbr.rel (%p21) target = $region8
    $region5: #{tpu_custom_call.1} parent=1 // loop_body
      %s25 = ssub.s32 %s20, 1
      %s26 = ssub.s32 %s20, 2
      %s27 = sadd.s32 %s20, 1
      %s28 = ssub.s32 %s20, %s27
      %p29 = scmp.eq.s32.totalorder %s28, 0
      %s31 = sadd.s32 %s30, 1
      %s32 = scalar_select %p29, %s30, %s31
      %p35 = pneg %p29
      %p36 = scmp.eq.s32.totalorder %s20, 1
      %p37 = por %p35, %p36
      %p38 = scmp.ne.s32.totalorder %s30, %s33
      %p39 = scmp.eq.s32.totalorder %s20, 0
      %p40 = por %p38, %p39
      %p41 = scmp.ne.s32.totalorder %s30, %s33
      %p42 = scmp.eq.s32.totalorder %s25, 1
      %p43 = por %p41, %p42
      %p44 = scmp.ne.s32.totalorder %s33, %s34
      %p45 = scmp.eq.s32.totalorder %s25, 0
      %p46 = por %p44, %p45
      %p47 = scmp.ne.s32.totalorder %s33, %s34
      %p48 = scmp.eq.s32.totalorder %s26, 1
      %p49 = por %p47, %p48
      %p51 = scmp.ne.s32.totalorder %s34, %s50
      %p52 = scmp.eq.s32.totalorder %s26, 0
      %p53 = por %p51, %p52
      %s54 = ssub.s32 %s20, %s27
      %p55 = scmp.eq.s32.totalorder %s54, 0
      %s57 = sadd.s32 %s56, 1
      %s58 = scalar_select %p55, %s56, %s57
      %p61 = pneg %p55
      %p62 = scmp.eq.s32.totalorder %s20, 1
      %p63 = por %p61, %p62
      %p64 = scmp.ne.s32.totalorder %s56, %s59
      %p65 = scmp.eq.s32.totalorder %s20, 0
      %p66 = por %p64, %p65
      %p67 = scmp.ne.s32.totalorder %s56, %s59
      %p68 = scmp.eq.s32.totalorder %s25, 1
      %p69 = por %p67, %p68
      %p70 = scmp.ne.s32.totalorder %s59, %s60
      %p71 = scmp.eq.s32.totalorder %s25, 0
      %p72 = por %p70, %p71
      %p73 = scmp.ne.s32.totalorder %s59, %s60
      %p74 = scmp.eq.s32.totalorder %s26, 1
      %p75 = por %p73, %p74
      %p77 = scmp.ne.s32.totalorder %s60, %s76
      %p78 = scmp.eq.s32.totalorder %s26, 0
      %p79 = por %p77, %p78
      %s80 = ssub.s32 %s20, %s27
      %p81 = scmp.eq.s32.totalorder %s80, 0
      %s83 = sadd.s32 %s82, 1
      %s84 = scalar_select %p81, %s82, %s83
      %p87 = pneg %p81
      %p88 = scmp.eq.s32.totalorder %s20, 1
      %p89 = por %p87, %p88
      %p90 = scmp.ne.s32.totalorder %s82, %s85
      %p91 = scmp.eq.s32.totalorder %s20, 0
      %p92 = por %p90, %p91
      %p93 = scmp.ne.s32.totalorder %s82, %s85
      %p94 = scmp.eq.s32.totalorder %s25, 1
      %p95 = por %p93, %p94
      %p96 = scmp.ne.s32.totalorder %s85, %s86
      %p97 = scmp.eq.s32.totalorder %s25, 0
      %p98 = por %p96, %p97
      %p99 = scmp.ne.s32.totalorder %s85, %s86
      %p100 = scmp.eq.s32.totalorder %s26, 1
      %p101 = por %p99, %p100
      %p103 = scmp.ne.s32.totalorder %s86, %s102
      %p104 = scmp.eq.s32.totalorder %s26, 0
      %p105 = por %p103, %p104
      %s106 = ssub.s32 %s20, %s27
      %p107 = scmp.eq.s32.totalorder %s106, 0
      %s109 = sadd.s32 %s108, 1
      %s110 = scalar_select %p107, %s108, %s109
      %p113 = pneg %p107
      %p114 = scmp.eq.s32.totalorder %s20, 1
      %p115 = por %p113, %p114
      %p116 = scmp.ne.s32.totalorder %s108, %s111
      %p117 = scmp.eq.s32.totalorder %s20, 0
      %p118 = por %p116, %p117
      %p119 = scmp.ne.s32.totalorder %s108, %s111
      %p120 = scmp.eq.s32.totalorder %s25, 1
      %p121 = por %p119, %p120
      %p122 = scmp.ne.s32.totalorder %s111, %s112
      %p123 = scmp.eq.s32.totalorder %s25, 0
      %p124 = por %p122, %p123
      %p125 = scmp.ne.s32.totalorder %s111, %s112
      %p126 = scmp.eq.s32.totalorder %s26, 1
      %p127 = por %p125, %p126
      %p129 = scmp.ne.s32.totalorder %s112, %s128
      %p130 = scmp.eq.s32.totalorder %s26, 0
      %p131 = por %p129, %p130
      %s132 = ssub.s32 %s20, %s27
      %p133 = scmp.eq.s32.totalorder %s132, 0
      %s135 = sadd.s32 %s134, 1
      %s136 = scalar_select %p133, %s134, %s135
      %p139 = pneg %p133
      %p140 = scmp.eq.s32.totalorder %s20, 1
      %p141 = por %p139, %p140
      %p142 = scmp.ne.s32.totalorder %s134, %s137
      %p143 = scmp.eq.s32.totalorder %s20, 0
      %p144 = por %p142, %p143
      %p145 = scmp.ne.s32.totalorder %s134, %s137
      %p146 = scmp.eq.s32.totalorder %s25, 1
      %p147 = por %p145, %p146
      %p148 = scmp.ne.s32.totalorder %s137, %s138
      %p149 = scmp.eq.s32.totalorder %s25, 0
      %p150 = por %p148, %p149
      %p151 = scmp.ne.s32.totalorder %s137, %s138
      %p152 = scmp.eq.s32.totalorder %s26, 1
      %p153 = por %p151, %p152
      %p155 = scmp.ne.s32.totalorder %s138, %s154
      %p156 = scmp.eq.s32.totalorder %s26, 0
      %p157 = por %p155, %p156
      %s158 = ssub.s32 %s20, %s27
      %p159 = scmp.eq.s32.totalorder %s158, 0
      %s161 = sadd.s32 %s160, 1
      %s162 = scalar_select %p159, %s160, %s161
      %p165 = pneg %p159
      %p166 = scmp.eq.s32.totalorder %s20, 1
      %p167 = por %p165, %p166
      %p168 = scmp.ne.s32.totalorder %s160, %s163
      %p169 = scmp.eq.s32.totalorder %s20, 0
      %p170 = por %p168, %p169
      %p171 = scmp.ne.s32.totalorder %s160, %s163
      %p172 = scmp.eq.s32.totalorder %s25, 1
      %p173 = por %p171, %p172
      %p174 = scmp.ne.s32.totalorder %s163, %s164
      %p175 = scmp.eq.s32.totalorder %s25, 0
      %p176 = por %p174, %p175
      %p177 = scmp.ne.s32.totalorder %s163, %s164
      %p178 = scmp.eq.s32.totalorder %s26, 1
      %p179 = por %p177, %p178
      %p181 = scmp.ne.s32.totalorder %s164, %s180
      %p182 = scmp.eq.s32.totalorder %s26, 0
      %p183 = por %p181, %p182
      %p184 = scmp.le.s32.totalorder 1, %s20
      %p185 = scmp.lt.s32.totalorder %s20, 3
      %p186 = pnand %p184, %p185
      %p187 = pneg %p186
      // Predicated region
      $region9: #{tpu_custom_call.1} parent=5 // pred_check
        _
      $region10: #{tpu_custom_call.1} parent=5 // pred_check_branch
        %189 = sbr.rel (%p186) target = $region12
      $region11: #{tpu_custom_call.1} parent=5 // pred_region
        %s190 = ssub.s32 %s20, 1
      $region12: #{tpu_custom_call.1} parent=5 // pred_fallthru
        _
      %p191 = scmp.lt.s32.totalorder %s20, 2
      // Predicated region
      $region13: #{tpu_custom_call.1} parent=5 // pred_check
        %p192 = pneg %p191
      $region14: #{tpu_custom_call.1} parent=5 // pred_check_branch
        %194 = sbr.rel (%p192) target = $region16
      $region15: #{tpu_custom_call.1} parent=5 // pred_region
        // Predicated region
        $region17: #{tpu_custom_call.1} parent=15 // pred_check
          %p195 = pneg %p40
        $region18: #{tpu_custom_call.1} parent=15 // pred_check_branch
          %197 = sbr.rel (%p195) target = $region20
        $region19: #{tpu_custom_call.1} parent=15 // pred_region
          %s198 = sand.u32 %s30, 1
          %s199 = scalar_lea.sflag [#allocation3], %s198
          %s200 = sand.u32 %s30, 1
          %s201 = smul.addr %s200, 8
          %s202 = scalar_lea.vmem [#allocation2], %s201
          %s204 = ssub.s32 128, 128
          %205 = vsyncadd %s199, %s204
          %s206 = smul.addr %s20, 128
          %s207 = scalar_lea.hbm %s0, %s206
          %s209 = sshll.u32 %s202, 4
          %s210 = int_to_ptr.vmem [resolvable:$true] %s209
          %212 = dma.hbm_to_vmem [thread:$0]  %s207, 128, %s210, %s199
        $region20: #{tpu_custom_call.1} parent=15 // pred_fallthru
          _
        // Predicated region
        $region21: #{tpu_custom_call.1} parent=15 // pred_check
          %p213 = pneg %p66
        $region22: #{tpu_custom_call.1} parent=15 // pred_check_branch
          %215 = sbr.rel (%p213) target = $region24
        $region23: #{tpu_custom_call.1} parent=15 // pred_region
          %p216 = scmp.lt.s32.totalorder %s20, 1
          %s217 = scalar_select %p216, %s20, 1
          %s218 = smul.addr %s217, 16
          %s219 = smul.addr %s218, 4
          %s220 = scalar_lea.vmem %s1, %s219
        $region24: #{tpu_custom_call.1} parent=15 // pred_fallthru
          _
        // Predicated region
        $region25: #{tpu_custom_call.1} parent=15 // pred_check
          %p221 = pneg %p92
        $region26: #{tpu_custom_call.1} parent=15 // pred_check_branch
          %223 = sbr.rel (%p221) target = $region28
        $region27: #{tpu_custom_call.1} parent=15 // pred_region
          %p224 = scmp.lt.s32.totalorder %s20, 1
          %s225 = scalar_select %p224, %s20, 1
          %s226 = smul.addr %s225, 8
          %s227 = smul.addr %s226, 4
          %s228 = scalar_lea.vmem %s2, %s227
        $region28: #{tpu_custom_call.1} parent=15 // pred_fallthru
          _
        // Predicated region
        $region29: #{tpu_custom_call.1} parent=15 // pred_check
          %p229 = pneg %p118
        $region30: #{tpu_custom_call.1} parent=15 // pred_check_branch
          %231 = sbr.rel (%p229) target = $region32
        $region31: #{tpu_custom_call.1} parent=15 // pred_region
          %s232 = sand.u32 %s108, 1
          %s233 = scalar_lea.sflag [#allocation6], %s232
          %s234 = sand.u32 %s108, 1
          %s235 = smul.addr %s234, 2048
          %s236 = scalar_lea.vmem [#allocation5], %s235
          %s238 = ssub.s32 32768, 32768
          %239 = vsyncadd %s233, %s238
          %s240 = smul.addr %s20, 512
          %s241 = smul.addr %s240, 64
          %s242 = scalar_lea.hbm %s3, %s241
          %s243 = sshll.u32 %s236, 4
          %s244 = int_to_ptr.vmem [resolvable:$true] %s243
          %249 = dma.hbm_to_vmem [thread:$0]  %s242, 32768, %s244, %s233, 256, 256, 16
        $region32: #{tpu_custom_call.1} parent=15 // pred_fallthru
          _
        // Predicated region
        $region33: #{tpu_custom_call.1} parent=15 // pred_check
          %p250 = pneg %p144
        $region34: #{tpu_custom_call.1} parent=15 // pred_check_branch
          %252 = sbr.rel (%p250) target = $region36
        $region35: #{tpu_custom_call.1} parent=15 // pred_region
          %p253 = scmp.lt.s32.totalorder %s20, 1
          %s254 = scalar_select %p253, %s20, 1
          %s255 = smul.addr %s254, 4
          %s256 = smul.addr %s255, 4
          %s257 = scalar_lea.vmem %s4, %s256
        $region36: #{tpu_custom_call.1} parent=15 // pred_fallthru
          _
      $region16: #{tpu_custom_call.1} parent=5 // pred_fallthru
        _
      %p258 = scmp.le.s32.totalorder 1, %s20
      %p259 = scmp.lt.s32.totalorder %s20, 3
      %p260 = pnand %p258, %p259
      %p261 = pneg %p260
      // Predicated region
      $region37: #{tpu_custom_call.1} parent=5 // pred_check
        _
      $region38: #{tpu_custom_call.1} parent=5 // pred_check_branch
        %263 = sbr.rel (%p260) target = $region40
      $region39: #{tpu_custom_call.1} parent=5 // pred_region
        %s264 = ssub.s32 %s20, 1
        %s265 = sand.u32 %s33, 1
        %s266 = scalar_lea.sflag [#allocation3], %s265
        %s267 = sand.u32 %s33, 1
        %s268 = smul.addr %s267, 8
        %s269 = scalar_lea.vmem [#allocation2], %s268
        // Predicated region
        $region41: #{tpu_custom_call.1} parent=39 // pred_check
          %p270 = pneg %p46
        $region42: #{tpu_custom_call.1} parent=39 // pred_check_branch
          %272 = sbr.rel (%p270) target = $region44
        $region43: #{tpu_custom_call.1} parent=39 // pred_region
          %273 = dma.done %s266, 128
        $region44: #{tpu_custom_call.1} parent=39 // pred_fallthru
          _
        %s274 = sand.u32 %s111, 1
        %s275 = scalar_lea.sflag [#allocation6], %s274
        %s276 = sand.u32 %s111, 1
        %s277 = smul.addr %s276, 2048
        %s278 = scalar_lea.vmem [#allocation5], %s277
        // Predicated region
        $region45: #{tpu_custom_call.1} parent=39 // pred_check
          %p279 = pneg %p124
        $region46: #{tpu_custom_call.1} parent=39 // pred_check_branch
          %281 = sbr.rel (%p279) target = $region48
        $region47: #{tpu_custom_call.1} parent=39 // pred_region
          %282 = dma.done %s275, 32768
        $region48: #{tpu_custom_call.1} parent=39 // pred_fallthru
          _
        %s283 = sand.u32 %s33, 1
        %s284 = scalar_lea.sflag [#allocation3], %s283
        %s285 = sand.u32 %s33, 1
        %s286 = smul.addr %s285, 8
        %s287 = scalar_lea.vmem [#allocation2], %s286
        %p288 = pneg %p46
        %p289 = pneg %p43
        %p290 = scmp.lt.s32.totalorder %s25, 1
        %s291 = scalar_select %p290, %s25, 1
        %s292 = smul.addr %s291, 16
        %s293 = smul.addr %s292, 4
        %s294 = scalar_lea.vmem %s1, %s293
        %p295 = pneg %p72
        %p296 = pneg %p69
        %p297 = scmp.lt.s32.totalorder %s25, 1
        %s298 = scalar_select %p297, %s25, 1
        %s299 = smul.addr %s298, 8
        %s300 = smul.addr %s299, 4
        %s301 = scalar_lea.vmem %s2, %s300
        %p302 = pneg %p98
        %p303 = pneg %p95
        %s304 = sand.u32 %s111, 1
        %s305 = scalar_lea.sflag [#allocation6], %s304
        %s306 = sand.u32 %s111, 1
        %s307 = smul.addr %s306, 2048
        %s308 = scalar_lea.vmem [#allocation5], %s307
        %p309 = pneg %p124
        %p310 = pneg %p121
        %p311 = scmp.lt.s32.totalorder %s25, 1
        %s312 = scalar_select %p311, %s25, 1
        %s313 = smul.addr %s312, 4
        %s314 = smul.addr %s313, 4
        %s315 = scalar_lea.vmem %s4, %s314
        %p316 = pneg %p150
        %p317 = pneg %p147
        %p318 = pneg %p176
        %p319 = pneg %p173
        %s320 = sand.u32 %s163, 1
        %s321 = scalar_lea.sflag [#allocation4], %s320
        %s322 = sand.u32 %s163, 1
        %s323 = smul.addr %s322, 32
        %s324 = scalar_lea.vmem [#allocation7], %s323
        %p325 = scmp.lt.s32.totalorder %s25, 1
        %s326 = scalar_select %p325, %s25, 1
        %s327 = smul.addr %s326, 16
        %s328 = smul.addr %s327, 4
        %s329 = scalar_lea.vmem %s1, %s328
        %p330 = scmp.lt.s32.totalorder %s25, 1
        %s331 = scalar_select %p330, %s25, 1
        %s332 = smul.addr %s331, 8
        %s333 = smul.addr %s332, 4
        %s334 = scalar_lea.vmem %s2, %s333
        %p335 = scmp.lt.s32.totalorder %s25, 1
        %s336 = scalar_select %p335, %s25, 1
        %s337 = smul.addr %s336, 4
        %s338 = smul.addr %s337, 4
        %s339 = scalar_lea.vmem %s4, %s338
        %v341 = vld [vmem:[%s269] sm:$0xff]
        %v342 = vpack.c.bf16 %v341, %v341
        %v343 = vld [vmem:[%s329] sm:$0xff]
        %v344 = vld [vmem:[%s329 + $0x8] sm:$0xff]
        %v345 = vld [vmem:[%s329 + $0x10] sm:$0xff]
        %v346 = vld [vmem:[%s329 + $0x18] sm:$0xff]
        %v347 = vld [vmem:[%s329 + $0x20] sm:$0x11]
        %v348 = vld [vmem:[%s329 + $0x28] sm:$0x11]
        %v349 = vld [vmem:[%s329 + $0x30] sm:$0x11]
        %v350 = vld [vmem:[%s329 + $0x38] sm:$0x11]
        %v351 = vld [vmem:[%s334] ss:$4 sm:$0xff]
        %v353 = vlaneseq
        %v354 = vshrl.u32 %v353, 7
        %v355 = vsub.s32 0, %v354
        %v356 = vrot.slane %v351, %v355
        %v357 = vlaneseq
        %v358 = vshrl.u32 %v357, 7
        %v359 = vsub.s32 1, %v358
        %v360 = vrot.slane %v351, %v359
        %v361 = vlaneseq
        %v362 = vshrl.u32 %v361, 7
        %v363 = vsub.s32 2, %v362
        %v364 = vrot.slane %v351, %v363
        %v365 = vlaneseq
        %v366 = vshrl.u32 %v365, 7
        %v367 = vsub.s32 3, %v366
        %v368 = vrot.slane %v351, %v367
        %v369 = vlaneseq
        %v370 = vshrl.u32 %v369, 7
        %v371 = vsub.s32 4, %v370
        %v372 = vrot.slane %v351, %v371
        %v373 = vlaneseq
        %v374 = vshrl.u32 %v373, 7
        %v375 = vsub.s32 5, %v374
        %v376 = vrot.slane %v351, %v375
        %v377 = vlaneseq
        %v378 = vshrl.u32 %v377, 7
        %v379 = vsub.s32 6, %v378
        %v380 = vrot.slane %v351, %v379
        %v381 = vlaneseq
        %v382 = vshrl.u32 %v381, 7
        %v383 = vsub.s32 7, %v382
        %v384 = vrot.slane %v351, %v383
        %v401 = vunpack.c.l.b16 %v343
        %v402 = vunpack.c.h.b16 %v343
        %v403 = vunpack.c.l.b16 %v344
        %v404 = vunpack.c.h.b16 %v344
        %v405 = vunpack.c.l.b16 %v345
        %v406 = vunpack.c.h.b16 %v345
        %v407 = vunpack.c.l.b16 %v346
        %v408 = vunpack.c.h.b16 %v346
        %v409 = vunpack.c.l.b16 %v347
        %v410 = vunpack.c.h.b16 %v347
        %v411 = vunpack.c.l.b16 %v348
        %v412 = vunpack.c.h.b16 %v348
        %v413 = vunpack.c.l.b16 %v349
        %v414 = vunpack.c.h.b16 %v349
        %v415 = vunpack.c.l.b16 %v350
        %v416 = vunpack.c.h.b16 %v350
        %v417 = vpack.c.b16 %v409, %v401
        %v418 = vpack.c.b16 %v410, %v402
        %v419 = vpack.c.b16 %v411, %v403
        %v420 = vpack.c.b16 %v412, %v404
        %v421 = vpack.c.b16 %v413, %v405
        %v422 = vpack.c.b16 %v414, %v406
        %v423 = vpack.c.b16 %v415, %v407
        %v424 = vpack.c.b16 %v416, %v408
        %vm425 = vcmask 80896
        %v427 = vsel %vm425, %v342, 0
        %vm429 = vcmask 1044480
        %v431 = vsel %vm429, %v417, 0
        %v434 = vsel %vm429, %v418, 0
        %v437 = vsel %vm429, %v419, 0
        %v440 = vsel %vm429, %v420, 0
        %v443 = vsel %vm429, %v421, 0
        %v446 = vsel %vm429, %v422, 0
        %v449 = vsel %vm429, %v423, 0
        %v452 = vsel %vm429, %v424, 0
        %454 = vmatprep.subr.bf16.mxu0 %v434
        %455 = vmatpush1.bf16.msra.mxu0 %v431
        %456 = vmatprep.subr.bf16.mxu0 0
        %457 = vmatpush1.bf16.msra.mxu0 0
        %458 = vmatprep.subr.bf16.mxu0 0
        %459 = vmatpush1.bf16.msra.mxu0 0
        %460 = vmatprep.subr.bf16.mxu0 0
        %461 = vmatpush1.bf16.msra.mxu0 0
        %462 = vmatprep.subr.bf16.mxu0 0
        %463 = vmatpush1.bf16.msra.mxu0 0
        %464 = vmatprep.subr.bf16.mxu0 0
        %465 = vmatpush1.bf16.msra.mxu0 0
        %466 = vmatprep.subr.bf16.mxu0 0
        %467 = vmatpush1.bf16.msra.mxu0 0
        %468 = vmatprep.subr.bf16.mxu0 0
        %469 = vmatpush1.bf16.msra.mxu0 0
        %470 = vmatprep.subr.bf16.mxu0 0
        %471 = vmatpush1.bf16.msra.mxu0 0
        %472 = vmatprep.subr.bf16.mxu0 0
        %473 = vmatpush1.bf16.msra.mxu0 0
        %474 = vmatprep.subr.bf16.mxu0 0
        %475 = vmatpush1.bf16.msra.mxu0 0
        %476 = vmatprep.subr.bf16.mxu0 0
        %477 = vmatpush1.bf16.msra.mxu0 0
        %478 = vmatprep.subr.bf16.mxu0 0
        %479 = vmatpush1.bf16.msra.mxu0 0
        %480 = vmatprep.subr.bf16.mxu0 0
        %481 = vmatpush1.bf16.msra.mxu0 0
        %482 = vmatprep.subr.bf16.mxu0 0
        %483 = vmatpush1.bf16.msra.mxu0 0
        %484 = vmatprep.subr.bf16.mxu0 0
        %485 = vmatpush1.bf16.msra.mxu0 0
        %486 = vmatprep.mubr.bf16.mxu0 0
        %487 = vmatmul.mubr.bf16.gmra.mrb[0].mxu0 %v427
        %v488 = vpop.f32.mrb[0].mxu0
        %v489 = vadd.f32 %v356, %v488
        %v490 = vpop.f32.mrb[0].mxu0
        %v491 = vadd.f32 %v360, %v490
        %v492 = vpop.f32.mrb[0].mxu0
        %v493 = vpop.f32.mrb[0].mxu0
        %494 = vdwg.mxu0
        %495 = vmatprep.subr.bf16.mxu0 %v440
        %496 = vmatpush1.bf16.msra.mxu0 %v437
        %497 = vmatprep.subr.bf16.mxu0 0
        %498 = vmatpush1.bf16.msra.mxu0 0
        %499 = vmatprep.subr.bf16.mxu0 0
        %500 = vmatpush1.bf16.msra.mxu0 0
        %501 = vmatprep.subr.bf16.mxu0 0
        %502 = vmatpush1.bf16.msra.mxu0 0
        %503 = vmatprep.subr.bf16.mxu0 0
        %504 = vmatpush1.bf16.msra.mxu0 0
        %505 = vmatprep.subr.bf16.mxu0 0
        %506 = vmatpush1.bf16.msra.mxu0 0
        %507 = vmatprep.subr.bf16.mxu0 0
        %508 = vmatpush1.bf16.msra.mxu0 0
        %509 = vmatprep.subr.bf16.mxu0 0
        %510 = vmatpush1.bf16.msra.mxu0 0
        %511 = vmatprep.subr.bf16.mxu0 0
        %512 = vmatpush1.bf16.msra.mxu0 0
        %513 = vmatprep.subr.bf16.mxu0 0
        %514 = vmatpush1.bf16.msra.mxu0 0
        %515 = vmatprep.subr.bf16.mxu0 0
        %516 = vmatpush1.bf16.msra.mxu0 0
        %517 = vmatprep.subr.bf16.mxu0 0
        %518 = vmatpush1.bf16.msra.mxu0 0
        %519 = vmatprep.subr.bf16.mxu0 0
        %520 = vmatpush1.bf16.msra.mxu0 0
        %521 = vmatprep.subr.bf16.mxu0 0
        %522 = vmatpush1.bf16.msra.mxu0 0
        %523 = vmatprep.subr.bf16.mxu0 0
        %524 = vmatpush1.bf16.msra.mxu0 0
        %525 = vmatprep.subr.bf16.mxu0 0
        %526 = vmatpush1.bf16.msra.mxu0 0
        %527 = vmatprep.mubr.bf16.mxu0 0
        %528 = vmatmul.mubr.bf16.gmra.mrb[0].mxu0 %v427
        %v529 = vpop.f32.mrb[0].mxu0
        %v530 = vadd.f32 %v364, %v529
        %v531 = vpop.f32.mrb[0].mxu0
        %v532 = vadd.f32 %v368, %v531
        %v533 = vpop.f32.mrb[0].mxu0
        %v534 = vpop.f32.mrb[0].mxu0
        %535 = vdwg.mxu0
        %536 = vmatprep.subr.bf16.mxu0 %v446
        %537 = vmatpush1.bf16.msra.mxu0 %v443
        %538 = vmatprep.subr.bf16.mxu0 0
        %539 = vmatpush1.bf16.msra.mxu0 0
        %540 = vmatprep.subr.bf16.mxu0 0
        %541 = vmatpush1.bf16.msra.mxu0 0
        %542 = vmatprep.subr.bf16.mxu0 0
        %543 = vmatpush1.bf16.msra.mxu0 0
        %544 = vmatprep.subr.bf16.mxu0 0
        %545 = vmatpush1.bf16.msra.mxu0 0
        %546 = vmatprep.subr.bf16.mxu0 0
        %547 = vmatpush1.bf16.msra.mxu0 0
        %548 = vmatprep.subr.bf16.mxu0 0
        %549 = vmatpush1.bf16.msra.mxu0 0
        %550 = vmatprep.subr.bf16.mxu0 0
        %551 = vmatpush1.bf16.msra.mxu0 0
        %552 = vmatprep.subr.bf16.mxu0 0
        %553 = vmatpush1.bf16.msra.mxu0 0
        %554 = vmatprep.subr.bf16.mxu0 0
        %555 = vmatpush1.bf16.msra.mxu0 0
        %556 = vmatprep.subr.bf16.mxu0 0
        %557 = vmatpush1.bf16.msra.mxu0 0
        %558 = vmatprep.subr.bf16.mxu0 0
        %559 = vmatpush1.bf16.msra.mxu0 0
        %560 = vmatprep.subr.bf16.mxu0 0
        %561 = vmatpush1.bf16.msra.mxu0 0
        %562 = vmatprep.subr.bf16.mxu0 0
        %563 = vmatpush1.bf16.msra.mxu0 0
        %564 = vmatprep.subr.bf16.mxu0 0
        %565 = vmatpush1.bf16.msra.mxu0 0
        %566 = vmatprep.subr.bf16.mxu0 0
        %567 = vmatpush1.bf16.msra.mxu0 0
        %568 = vmatprep.mubr.bf16.mxu0 0
        %569 = vmatmul.mubr.bf16.gmra.mrb[0].mxu0 %v427
        %v570 = vpop.f32.mrb[0].mxu0
        %v571 = vadd.f32 %v372, %v570
        %v572 = vpop.f32.mrb[0].mxu0
        %v573 = vadd.f32 %v376, %v572
        %v574 = vpop.f32.mrb[0].mxu0
        %v575 = vpop.f32.mrb[0].mxu0
        %576 = vdwg.mxu0
        %577 = vmatprep.subr.bf16.mxu0 %v452
        %578 = vmatpush1.bf16.msra.mxu0 %v449
        %579 = vmatprep.subr.bf16.mxu0 0
        %580 = vmatpush1.bf16.msra.mxu0 0
        %581 = vmatprep.subr.bf16.mxu0 0
        %582 = vmatpush1.bf16.msra.mxu0 0
        %583 = vmatprep.subr.bf16.mxu0 0
        %584 = vmatpush1.bf16.msra.mxu0 0
        %585 = vmatprep.subr.bf16.mxu0 0
        %586 = vmatpush1.bf16.msra.mxu0 0
        %587 = vmatprep.subr.bf16.mxu0 0
        %588 = vmatpush1.bf16.msra.mxu0 0
        %589 = vmatprep.subr.bf16.mxu0 0
        %590 = vmatpush1.bf16.msra.mxu0 0
        %591 = vmatprep.subr.bf16.mxu0 0
        %592 = vmatpush1.bf16.msra.mxu0 0
        %593 = vmatprep.subr.bf16.mxu0 0
        %594 = vmatpush1.bf16.msra.mxu0 0
        %595 = vmatprep.subr.bf16.mxu0 0
        %596 = vmatpush1.bf16.msra.mxu0 0
        %597 = vmatprep.subr.bf16.mxu0 0
        %598 = vmatpush1.bf16.msra.mxu0 0
        %599 = vmatprep.subr.bf16.mxu0 0
        %600 = vmatpush1.bf16.msra.mxu0 0
        %601 = vmatprep.subr.bf16.mxu0 0
        %602 = vmatpush1.bf16.msra.mxu0 0
        %603 = vmatprep.subr.bf16.mxu0 0
        %604 = vmatpush1.bf16.msra.mxu0 0
        %605 = vmatprep.subr.bf16.mxu0 0
        %606 = vmatpush1.bf16.msra.mxu0 0
        %607 = vmatprep.subr.bf16.mxu0 0
        %608 = vmatpush1.bf16.msra.mxu0 0
        %609 = vmatprep.mubr.bf16.mxu0 0
        %610 = vmatmul.mubr.bf16.gmra.mrb[0].mxu0 %v427
        %v611 = vpop.f32.mrb[0].mxu0
        %v612 = vadd.f32 %v380, %v611
        %v613 = vpop.f32.mrb[0].mxu0
        %v614 = vadd.f32 %v384, %v613
        %v615 = vpop.f32.mrb[0].mxu0
        %v616 = vpop.f32.mrb[0].mxu0
        %617 = vdwg.mxu0
        %v618 = vrot.slane %v489, 4
        %v619 = vadd.f32 %v489, %v618
        %v620 = vrot.slane %v619, 2
        %v621 = vadd.f32 %v619, %v620
        %v622 = vrot.slane %v621, 1
        %v623 = vadd.f32 %v621, %v622
        %v624 = vrot.slane %v491, 4
        %v625 = vadd.f32 %v491, %v624
        %v626 = vrot.slane %v625, 2
        %v627 = vadd.f32 %v625, %v626
        %v628 = vrot.slane %v627, 1
        %v629 = vadd.f32 %v627, %v628
        %v630 = vrot.slane %v530, 4
        %v631 = vadd.f32 %v530, %v630
        %v632 = vrot.slane %v631, 2
        %v633 = vadd.f32 %v631, %v632
        %v634 = vrot.slane %v633, 1
        %v635 = vadd.f32 %v633, %v634
        %v636 = vrot.slane %v532, 4
        %v637 = vadd.f32 %v532, %v636
        %v638 = vrot.slane %v637, 2
        %v639 = vadd.f32 %v637, %v638
        %v640 = vrot.slane %v639, 1
        %v641 = vadd.f32 %v639, %v640
        %v642 = vrot.slane %v571, 4
        %v643 = vadd.f32 %v571, %v642
        %v644 = vrot.slane %v643, 2
        %v645 = vadd.f32 %v643, %v644
        %v646 = vrot.slane %v645, 1
        %v647 = vadd.f32 %v645, %v646
        %v648 = vrot.slane %v573, 4
        %v649 = vadd.f32 %v573, %v648
        %v650 = vrot.slane %v649, 2
        %v651 = vadd.f32 %v649, %v650
        %v652 = vrot.slane %v651, 1
        %v653 = vadd.f32 %v651, %v652
        %v654 = vrot.slane %v612, 4
        %v655 = vadd.f32 %v612, %v654
        %v656 = vrot.slane %v655, 2
        %v657 = vadd.f32 %v655, %v656
        %v658 = vrot.slane %v657, 1
        %v659 = vadd.f32 %v657, %v658
        %v660 = vrot.slane %v614, 4
        %v661 = vadd.f32 %v614, %v660
        %v662 = vrot.slane %v661, 2
        %v663 = vadd.f32 %v661, %v662
        %v664 = vrot.slane %v663, 1
        %v665 = vadd.f32 %v663, %v664
        %v666 = vmul.f32 %v623, 0.125
        %v667 = vmul.f32 %v629, 0.125
        %v668 = vmul.f32 %v635, 0.125
        %v669 = vmul.f32 %v641, 0.125
        %v670 = vmul.f32 %v647, 0.125
        %v671 = vmul.f32 %v653, 0.125
        %v672 = vmul.f32 %v659, 0.125
        %v673 = vmul.f32 %v665, 0.125
        %v674 = vmul.f32 %v489, %v489
        %v675 = vmul.f32 %v491, %v491
        %v676 = vmul.f32 %v530, %v530
        %v677 = vmul.f32 %v532, %v532
        %v678 = vmul.f32 %v571, %v571
        %v679 = vmul.f32 %v573, %v573
        %v680 = vmul.f32 %v612, %v612
        %v681 = vmul.f32 %v614, %v614
        %v682 = vrot.slane %v674, 4
        %v683 = vadd.f32 %v674, %v682
        %v684 = vrot.slane %v683, 2
        %v685 = vadd.f32 %v683, %v684
        %v686 = vrot.slane %v685, 1
        %v687 = vadd.f32 %v685, %v686
        %v688 = vrot.slane %v675, 4
        %v689 = vadd.f32 %v675, %v688
        %v690 = vrot.slane %v689, 2
        %v691 = vadd.f32 %v689, %v690
        %v692 = vrot.slane %v691, 1
        %v693 = vadd.f32 %v691, %v692
        %v694 = vrot.slane %v676, 4
        %v695 = vadd.f32 %v676, %v694
        %v696 = vrot.slane %v695, 2
        %v697 = vadd.f32 %v695, %v696
        %v698 = vrot.slane %v697, 1
        %v699 = vadd.f32 %v697, %v698
        %v700 = vrot.slane %v677, 4
        %v701 = vadd.f32 %v677, %v700
        %v702 = vrot.slane %v701, 2
        %v703 = vadd.f32 %v701, %v702
        %v704 = vrot.slane %v703, 1
        %v705 = vadd.f32 %v703, %v704
        %v706 = vrot.slane %v678, 4
        %v707 = vadd.f32 %v678, %v706
        %v708 = vrot.slane %v707, 2
        %v709 = vadd.f32 %v707, %v708
        %v710 = vrot.slane %v709, 1
        %v711 = vadd.f32 %v709, %v710
        %v712 = vrot.slane %v679, 4
        %v713 = vadd.f32 %v679, %v712
        %v714 = vrot.slane %v713, 2
        %v715 = vadd.f32 %v713, %v714
        %v716 = vrot.slane %v715, 1
        %v717 = vadd.f32 %v715, %v716
        %v718 = vrot.slane %v680, 4
        %v719 = vadd.f32 %v680, %v718
        %v720 = vrot.slane %v719, 2
        %v721 = vadd.f32 %v719, %v720
        %v722 = vrot.slane %v721, 1
        %v723 = vadd.f32 %v721, %v722
        %v724 = vrot.slane %v681, 4
        %v725 = vadd.f32 %v681, %v724
        %v726 = vrot.slane %v725, 2
        %v727 = vadd.f32 %v725, %v726
        %v728 = vrot.slane %v727, 1
        %v729 = vadd.f32 %v727, %v728
        %v730 = vmul.f32 %v687, 0.125
        %v731 = vmul.f32 %v693, 0.125
        %v732 = vmul.f32 %v699, 0.125
        %v733 = vmul.f32 %v705, 0.125
        %v734 = vmul.f32 %v711, 0.125
        %v735 = vmul.f32 %v717, 0.125
        %v736 = vmul.f32 %v723, 0.125
        %v737 = vmul.f32 %v729, 0.125
        %v738 = vmul.f32 %v666, %v666
        %v739 = vmul.f32 %v667, %v667
        %v740 = vmul.f32 %v668, %v668
        %v741 = vmul.f32 %v669, %v669
        %v742 = vmul.f32 %v670, %v670
        %v743 = vmul.f32 %v671, %v671
        %v744 = vmul.f32 %v672, %v672
        %v745 = vmul.f32 %v673, %v673
        %v746 = vsub.f32 %v730, %v738
        %v747 = vsub.f32 %v731, %v739
        %v748 = vsub.f32 %v732, %v740
        %v749 = vsub.f32 %v733, %v741
        %v750 = vsub.f32 %v734, %v742
        %v751 = vsub.f32 %v735, %v743
        %v752 = vsub.f32 %v736, %v744
        %v753 = vsub.f32 %v737, %v745
        %v754 = vmax.f32 %v746, 0.0
        %v755 = vmax.f32 %v747, 0.0
        %v756 = vmax.f32 %v748, 0.0
        %v757 = vmax.f32 %v749, 0.0
        %v758 = vmax.f32 %v750, 0.0
        %v759 = vmax.f32 %v751, 0.0
        %v760 = vmax.f32 %v752, 0.0
        %v761 = vmax.f32 %v753, 0.0
        %s762 = scalar_lea.vmem %s334, 1
        %v763 = vld [vmem:[%s762] ss:$4 sm:$0xff]
        %v764 = vadd.f32 %v754, 1e-05
        %v765 = vadd.f32 %v755, 1e-05
        %v766 = vadd.f32 %v756, 1e-05
        %v767 = vadd.f32 %v757, 1e-05
        %v768 = vadd.f32 %v758, 1e-05
        %v769 = vadd.f32 %v759, 1e-05
        %v770 = vadd.f32 %v760, 1e-05
        %v771 = vadd.f32 %v761, 1e-05
        %v772 = vrsqrt.pop %v764
        %v773 = vrsqrt.pop %v765
        %v774 = vrsqrt.pop %v766
        %v775 = vrsqrt.pop %v767
        %v776 = vrsqrt.pop %v768
        %v777 = vrsqrt.pop %v769
        %v778 = vrsqrt.pop %v770
        %v779 = vrsqrt.pop %v771
        %v788 = vcombine.low %v772, %v773
        %v789 = vcombine.low %v774, %v775
        %v790 = vcombine.low %v776, %v777
        %v791 = vcombine.low %v778, %v779
        %v793 = vunpack.c.l.s4 1966171168
        %v794 = vunpack.c.0.s8 %v793
        %v795 = vlaneseq
        %v796 = vshrl.u32 %v795, 7
        %v797 = vsub.s32 %v794, %v796
        %v798 = vrot.slane %v788, %v797
        %v800 = vunpack.c.l.s4 1966171168
        %v801 = vunpack.c.0.s8 %v800
        %v802 = vlaneseq
        %v803 = vshrl.u32 %v802, 7
        %v804 = vsub.s32 %v801, %v803
        %v805 = vrot.slane %v789, %v804
        %v807 = vunpack.c.l.s4 1966171168
        %v808 = vunpack.c.0.s8 %v807
        %v809 = vlaneseq
        %v810 = vshrl.u32 %v809, 7
        %v811 = vsub.s32 %v808, %v810
        %v812 = vrot.slane %v790, %v811
        %v814 = vunpack.c.l.s4 1966171168
        %v815 = vunpack.c.0.s8 %v814
        %v816 = vlaneseq
        %v817 = vshrl.u32 %v816, 7
        %v818 = vsub.s32 %v815, %v817
        %v819 = vrot.slane %v791, %v818
        %v820 = vcombine.low %v798, %v805
        %v821 = vcombine.low %v812, %v819
        %v823 = vunpack.c.l.s4 1966171168
        %v824 = vunpack.c.0.s8 %v823
        %v825 = vlaneseq
        %v826 = vshrl.u32 %v825, 7
        %v827 = vsub.s32 %v824, %v826
        %v828 = vrot.slane %v820, %v827
        %v830 = vunpack.c.l.s4 1966171168
        %v831 = vunpack.c.0.s8 %v830
        %v832 = vlaneseq
        %v833 = vshrl.u32 %v832, 7
        %v834 = vsub.s32 %v831, %v833
        %v835 = vrot.slane %v821, %v834
        %v836 = vcombine.low %v828, %v835
        %v838 = vmul.f32 %v763, %v836
        %s839 = scalar_lea.vmem %s334, 2
        %v840 = vld [vmem:[%s839] ss:$4 sm:$0xff]
        %v842 = vlaneseq
        %v843 = vshrl.u32 %v842, 7
        %v844 = vsub.s32 0, %v843
        %v845 = vrot.slane %v838, %v844
        %v846 = vlaneseq
        %v847 = vshrl.u32 %v846, 7
        %v848 = vsub.s32 1, %v847
        %v849 = vrot.slane %v838, %v848
        %v850 = vlaneseq
        %v851 = vshrl.u32 %v850, 7
        %v852 = vsub.s32 2, %v851
        %v853 = vrot.slane %v838, %v852
        %v854 = vlaneseq
        %v855 = vshrl.u32 %v854, 7
        %v856 = vsub.s32 3, %v855
        %v857 = vrot.slane %v838, %v856
        %v858 = vlaneseq
        %v859 = vshrl.u32 %v858, 7
        %v860 = vsub.s32 4, %v859
        %v861 = vrot.slane %v838, %v860
        %v862 = vlaneseq
        %v863 = vshrl.u32 %v862, 7
        %v864 = vsub.s32 5, %v863
        %v865 = vrot.slane %v838, %v864
        %v866 = vlaneseq
        %v867 = vshrl.u32 %v866, 7
        %v868 = vsub.s32 6, %v867
        %v869 = vrot.slane %v838, %v868
        %v870 = vlaneseq
        %v871 = vshrl.u32 %v870, 7
        %v872 = vsub.s32 7, %v871
        %v873 = vrot.slane %v838, %v872
        %v882 = vmul.f32 %v666, %v845
        %v883 = vmul.f32 %v667, %v849
        %v884 = vmul.f32 %v668, %v853
        %v885 = vmul.f32 %v669, %v857
        %v886 = vmul.f32 %v670, %v861
        %v887 = vmul.f32 %v671, %v865
        %v888 = vmul.f32 %v672, %v869
        %v889 = vmul.f32 %v673, %v873
        %v898 = vcombine.low %v882, %v883
        %v899 = vcombine.low %v884, %v885
        %v900 = vcombine.low %v886, %v887
        %v901 = vcombine.low %v888, %v889
        %v903 = vunpack.c.l.s4 1966171168
        %v904 = vunpack.c.0.s8 %v903
        %v905 = vlaneseq
        %v906 = vshrl.u32 %v905, 7
        %v907 = vsub.s32 %v904, %v906
        %v908 = vrot.slane %v898, %v907
        %v910 = vunpack.c.l.s4 1966171168
        %v911 = vunpack.c.0.s8 %v910
        %v912 = vlaneseq
        %v913 = vshrl.u32 %v912, 7
        %v914 = vsub.s32 %v911, %v913
        %v915 = vrot.slane %v899, %v914
        %v917 = vunpack.c.l.s4 1966171168
        %v918 = vunpack.c.0.s8 %v917
        %v919 = vlaneseq
        %v920 = vshrl.u32 %v919, 7
        %v921 = vsub.s32 %v918, %v920
        %v922 = vrot.slane %v900, %v921
        %v924 = vunpack.c.l.s4 1966171168
        %v925 = vunpack.c.0.s8 %v924
        %v926 = vlaneseq
        %v927 = vshrl.u32 %v926, 7
        %v928 = vsub.s32 %v925, %v927
        %v929 = vrot.slane %v901, %v928
        %v930 = vcombine.low %v908, %v915
        %v931 = vcombine.low %v922, %v929
        %v933 = vunpack.c.l.s4 1966171168
        %v934 = vunpack.c.0.s8 %v933
        %v935 = vlaneseq
        %v936 = vshrl.u32 %v935, 7
        %v937 = vsub.s32 %v934, %v936
        %v938 = vrot.slane %v930, %v937
        %v940 = vunpack.c.l.s4 1966171168
        %v941 = vunpack.c.0.s8 %v940
        %v942 = vlaneseq
        %v943 = vshrl.u32 %v942, 7
        %v944 = vsub.s32 %v941, %v943
        %v945 = vrot.slane %v931, %v944
        %v946 = vcombine.low %v938, %v945
        %v948 = vsub.f32 %v840, %v946
        %v949 = vmul.f32 %v489, %v845
        %v950 = vmul.f32 %v491, %v849
        %v951 = vmul.f32 %v530, %v853
        %v952 = vmul.f32 %v532, %v857
        %v953 = vmul.f32 %v571, %v861
        %v954 = vmul.f32 %v573, %v865
        %v955 = vmul.f32 %v612, %v869
        %v956 = vmul.f32 %v614, %v873
        %v958 = vlaneseq
        %v959 = vshrl.u32 %v958, 7
        %v960 = vsub.s32 0, %v959
        %v961 = vrot.slane %v948, %v960
        %v962 = vlaneseq
        %v963 = vshrl.u32 %v962, 7
        %v964 = vsub.s32 1, %v963
        %v965 = vrot.slane %v948, %v964
        %v966 = vlaneseq
        %v967 = vshrl.u32 %v966, 7
        %v968 = vsub.s32 2, %v967
        %v969 = vrot.slane %v948, %v968
        %v970 = vlaneseq
        %v971 = vshrl.u32 %v970, 7
        %v972 = vsub.s32 3, %v971
        %v973 = vrot.slane %v948, %v972
        %v974 = vlaneseq
        %v975 = vshrl.u32 %v974, 7
        %v976 = vsub.s32 4, %v975
        %v977 = vrot.slane %v948, %v976
        %v978 = vlaneseq
        %v979 = vshrl.u32 %v978, 7
        %v980 = vsub.s32 5, %v979
        %v981 = vrot.slane %v948, %v980
        %v982 = vlaneseq
        %v983 = vshrl.u32 %v982, 7
        %v984 = vsub.s32 6, %v983
        %v985 = vrot.slane %v948, %v984
        %v986 = vlaneseq
        %v987 = vshrl.u32 %v986, 7
        %v988 = vsub.s32 7, %v987
        %v989 = vrot.slane %v948, %v988
        %v998 = vadd.f32 %v949, %v961
        %v999 = vadd.f32 %v950, %v965
        %v1000 = vadd.f32 %v951, %v969
        %v1001 = vadd.f32 %v952, %v973
        %v1002 = vadd.f32 %v953, %v977
        %v1003 = vadd.f32 %v954, %v981
        %v1004 = vadd.f32 %v955, %v985
        %v1005 = vadd.f32 %v956, %v989
        %v1006 = vmax.f32 %v998, 0.0
        %v1007 = vmax.f32 %v999, 0.0
        %v1008 = vmax.f32 %v1000, 0.0
        %v1009 = vmax.f32 %v1001, 0.0
        %v1010 = vmax.f32 %v1002, 0.0
        %v1011 = vmax.f32 %v1003, 0.0
        %v1012 = vmax.f32 %v1004, 0.0
        %v1013 = vmax.f32 %v1005, 0.0
        %v1014 = vpack.c.bf16 %v1006, %v1006
        %v1015 = vpack.c.bf16 %v1007, %v1007
        %v1016 = vpack.c.bf16 %v1008, %v1008
        %v1017 = vpack.c.bf16 %v1009, %v1009
        %v1018 = vpack.c.bf16 %v1010, %v1010
        %v1019 = vpack.c.bf16 %v1011, %v1011
        %v1020 = vpack.c.bf16 %v1012, %v1012
        %v1021 = vpack.c.bf16 %v1013, %v1013
        %v1022 = vld [vmem:[%s278] sm:$0xff]
        %v1023 = vld [vmem:[%s278 + $0x8] sm:$0xff]
        %v1024 = vld [vmem:[%s278 + $0x10] sm:$0xff]
        %v1025 = vld [vmem:[%s278 + $0x18] sm:$0xff]
        %v1026 = vld [vmem:[%s278 + $0x20] sm:$0xff]
        %v1027 = vld [vmem:[%s278 + $0x28] sm:$0xff]
        %v1028 = vld [vmem:[%s278 + $0x30] sm:$0xff]
        %v1029 = vld [vmem:[%s278 + $0x38] sm:$0xff]
        %v1030 = vld [vmem:[%s278 + $0x40] sm:$0xff]
        %v1031 = vld [vmem:[%s278 + $0x48] sm:$0xff]
        %v1032 = vld [vmem:[%s278 + $0x50] sm:$0xff]
        %v1033 = vld [vmem:[%s278 + $0x58] sm:$0xff]
        %v1034 = vld [vmem:[%s278 + $0x60] sm:$0xff]
        %v1035 = vld [vmem:[%s278 + $0x68] sm:$0xff]
        %v1036 = vld [vmem:[%s278 + $0x70] sm:$0xff]
        %v1037 = vld [vmem:[%s278 + $0x78] sm:$0xff]
        %v1038 = vld [vmem:[%s278 + $0x80] sm:$0xff]
        %v1039 = vld [vmem:[%s278 + $0x88] sm:$0xff]
        %v1040 = vld [vmem:[%s278 + $0x90] sm:$0xff]
        %v1041 = vld [vmem:[%s278 + $0x98] sm:$0xff]
        %v1042 = vld [vmem:[%s278 + $0xa0] sm:$0xff]
        %v1043 = vld [vmem:[%s278 + $0xa8] sm:$0xff]
        %v1044 = vld [vmem:[%s278 + $0xb0] sm:$0xff]
        %v1045 = vld [vmem:[%s278 + $0xb8] sm:$0xff]
        %v1046 = vld [vmem:[%s278 + $0xc0] sm:$0xff]
        %v1047 = vld [vmem:[%s278 + $0xc8] sm:$0xff]
        %v1048 = vld [vmem:[%s278 + $0xd0] sm:$0xff]
        %v1049 = vld [vmem:[%s278 + $0xd8] sm:$0xff]
        %v1050 = vld [vmem:[%s278 + $0xe0] sm:$0xff]
        %v1051 = vld [vmem:[%s278 + $0xe8] sm:$0xff]
        %v1052 = vld [vmem:[%s278 + $0xf0] sm:$0xff]
        %v1053 = vld [vmem:[%s278 + $0xf8] sm:$0xff]
        %v1054 = vld [vmem:[%s278 + $0x100] sm:$0xff]
        %v1055 = vld [vmem:[%s278 + $0x108] sm:$0xff]
        %v1056 = vld [vmem:[%s278 + $0x110] sm:$0xff]
        %v1057 = vld [vmem:[%s278 + $0x118] sm:$0xff]
        %v1058 = vld [vmem:[%s278 + $0x120] sm:$0xff]
        %v1059 = vld [vmem:[%s278 + $0x128] sm:$0xff]
        %v1060 = vld [vmem:[%s278 + $0x130] sm:$0xff]
        %v1061 = vld [vmem:[%s278 + $0x138] sm:$0xff]
        %v1062 = vld [vmem:[%s278 + $0x140] sm:$0xff]
        %v1063 = vld [vmem:[%s278 + $0x148] sm:$0xff]
        %v1064 = vld [vmem:[%s278 + $0x150] sm:$0xff]
        %v1065 = vld [vmem:[%s278 + $0x158] sm:$0xff]
        %v1066 = vld [vmem:[%s278 + $0x160] sm:$0xff]
        %v1067 = vld [vmem:[%s278 + $0x168] sm:$0xff]
        %v1068 = vld [vmem:[%s278 + $0x170] sm:$0xff]
        %v1069 = vld [vmem:[%s278 + $0x178] sm:$0xff]
        %v1070 = vld [vmem:[%s278 + $0x180] sm:$0xff]
        %v1071 = vld [vmem:[%s278 + $0x188] sm:$0xff]
        %v1072 = vld [vmem:[%s278 + $0x190] sm:$0xff]
        %v1073 = vld [vmem:[%s278 + $0x198] sm:$0xff]
        %v1074 = vld [vmem:[%s278 + $0x1a0] sm:$0xff]
        %v1075 = vld [vmem:[%s278 + $0x1a8] sm:$0xff]
        %v1076 = vld [vmem:[%s278 + $0x1b0] sm:$0xff]
        %v1077 = vld [vmem:[%s278 + $0x1b8] sm:$0xff]
        %v1078 = vld [vmem:[%s278 + $0x1c0] sm:$0xff]
        %v1079 = vld [vmem:[%s278 + $0x1c8] sm:$0xff]
        %v1080 = vld [vmem:[%s278 + $0x1d0] sm:$0xff]
        %v1081 = vld [vmem:[%s278 + $0x1d8] sm:$0xff]
        %v1082 = vld [vmem:[%s278 + $0x1e0] sm:$0xff]
        %v1083 = vld [vmem:[%s278 + $0x1e8] sm:$0xff]
        %v1084 = vld [vmem:[%s278 + $0x1f0] sm:$0xff]
        %v1085 = vld [vmem:[%s278 + $0x1f8] sm:$0xff]
        %v1086 = vld [vmem:[%s278 + $0x200] sm:$0xff]
        %v1087 = vld [vmem:[%s278 + $0x208] sm:$0xff]
        %v1088 = vld [vmem:[%s278 + $0x210] sm:$0xff]
        %v1089 = vld [vmem:[%s278 + $0x218] sm:$0xff]
        %v1090 = vld [vmem:[%s278 + $0x220] sm:$0xff]
        %v1091 = vld [vmem:[%s278 + $0x228] sm:$0xff]
        %v1092 = vld [vmem:[%s278 + $0x230] sm:$0xff]
        %v1093 = vld [vmem:[%s278 + $0x238] sm:$0xff]
        %v1094 = vld [vmem:[%s278 + $0x240] sm:$0xff]
        %v1095 = vld [vmem:[%s278 + $0x248] sm:$0xff]
        %v1096 = vld [vmem:[%s278 + $0x250] sm:$0xff]
        %v1097 = vld [vmem:[%s278 + $0x258] sm:$0xff]
        %v1098 = vld [vmem:[%s278 + $0x260] sm:$0xff]
        %v1099 = vld [vmem:[%s278 + $0x268] sm:$0xff]
        %v1100 = vld [vmem:[%s278 + $0x270] sm:$0xff]
        %v1101 = vld [vmem:[%s278 + $0x278] sm:$0xff]
        %v1102 = vld [vmem:[%s278 + $0x280] sm:$0xff]
        %v1103 = vld [vmem:[%s278 + $0x288] sm:$0xff]
        %v1104 = vld [vmem:[%s278 + $0x290] sm:$0xff]
        %v1105 = vld [vmem:[%s278 + $0x298] sm:$0xff]
        %v1106 = vld [vmem:[%s278 + $0x2a0] sm:$0xff]
        %v1107 = vld [vmem:[%s278 + $0x2a8] sm:$0xff]
        %v1108 = vld [vmem:[%s278 + $0x2b0] sm:$0xff]
        %v1109 = vld [vmem:[%s278 + $0x2b8] sm:$0xff]
        %v1110 = vld [vmem:[%s278 + $0x2c0] sm:$0xff]
        %v1111 = vld [vmem:[%s278 + $0x2c8] sm:$0xff]
        %v1112 = vld [vmem:[%s278 + $0x2d0] sm:$0xff]
        %v1113 = vld [vmem:[%s278 + $0x2d8] sm:$0xff]
        %v1114 = vld [vmem:[%s278 + $0x2e0] sm:$0xff]
        %v1115 = vld [vmem:[%s278 + $0x2e8] sm:$0xff]
        %v1116 = vld [vmem:[%s278 + $0x2f0] sm:$0xff]
        %v1117 = vld [vmem:[%s278 + $0x2f8] sm:$0xff]
        %v1118 = vld [vmem:[%s278 + $0x300] sm:$0xff]
        %v1119 = vld [vmem:[%s278 + $0x308] sm:$0xff]
        %v1120 = vld [vmem:[%s278 + $0x310] sm:$0xff]
        %v1121 = vld [vmem:[%s278 + $0x318] sm:$0xff]
        %v1122 = vld [vmem:[%s278 + $0x320] sm:$0xff]
        %v1123 = vld [vmem:[%s278 + $0x328] sm:$0xff]
        %v1124 = vld [vmem:[%s278 + $0x330] sm:$0xff]
        %v1125 = vld [vmem:[%s278 + $0x338] sm:$0xff]
        %v1126 = vld [vmem:[%s278 + $0x340] sm:$0xff]
        %v1127 = vld [vmem:[%s278 + $0x348] sm:$0xff]
        %v1128 = vld [vmem:[%s278 + $0x350] sm:$0xff]
        %v1129 = vld [vmem:[%s278 + $0x358] sm:$0xff]
        %v1130 = vld [vmem:[%s278 + $0x360] sm:$0xff]
        %v1131 = vld [vmem:[%s278 + $0x368] sm:$0xff]
        %v1132 = vld [vmem:[%s278 + $0x370] sm:$0xff]
        %v1133 = vld [vmem:[%s278 + $0x378] sm:$0xff]
        %v1134 = vld [vmem:[%s278 + $0x380] sm:$0xff]
        %v1135 = vld [vmem:[%s278 + $0x388] sm:$0xff]
        %v1136 = vld [vmem:[%s278 + $0x390] sm:$0xff]
        %v1137 = vld [vmem:[%s278 + $0x398] sm:$0xff]
        %v1138 = vld [vmem:[%s278 + $0x3a0] sm:$0xff]
        %v1139 = vld [vmem:[%s278 + $0x3a8] sm:$0xff]
        %v1140 = vld [vmem:[%s278 + $0x3b0] sm:$0xff]
        %v1141 = vld [vmem:[%s278 + $0x3b8] sm:$0xff]
        %v1142 = vld [vmem:[%s278 + $0x3c0] sm:$0xff]
        %v1143 = vld [vmem:[%s278 + $0x3c8] sm:$0xff]
        %v1144 = vld [vmem:[%s278 + $0x3d0] sm:$0xff]
        %v1145 = vld [vmem:[%s278 + $0x3d8] sm:$0xff]
        %v1146 = vld [vmem:[%s278 + $0x3e0] sm:$0xff]
        %v1147 = vld [vmem:[%s278 + $0x3e8] sm:$0xff]
        %v1148 = vld [vmem:[%s278 + $0x3f0] sm:$0xff]
        %v1149 = vld [vmem:[%s278 + $0x3f8] sm:$0xff]
        %v1150 = vld [vmem:[%s278 + $0x400] sm:$0xff]
        %v1151 = vld [vmem:[%s278 + $0x408] sm:$0xff]
        %v1152 = vld [vmem:[%s278 + $0x410] sm:$0xff]
        %v1153 = vld [vmem:[%s278 + $0x418] sm:$0xff]
        %v1154 = vld [vmem:[%s278 + $0x420] sm:$0xff]
        %v1155 = vld [vmem:[%s278 + $0x428] sm:$0xff]
        %v1156 = vld [vmem:[%s278 + $0x430] sm:$0xff]
        %v1157 = vld [vmem:[%s278 + $0x438] sm:$0xff]
        %v1158 = vld [vmem:[%s278 + $0x440] sm:$0xff]
        %v1159 = vld [vmem:[%s278 + $0x448] sm:$0xff]
        %v1160 = vld [vmem:[%s278 + $0x450] sm:$0xff]
        %v1161 = vld [vmem:[%s278 + $0x458] sm:$0xff]
        %v1162 = vld [vmem:[%s278 + $0x460] sm:$0xff]
        %v1163 = vld [vmem:[%s278 + $0x468] sm:$0xff]
        %v1164 = vld [vmem:[%s278 + $0x470] sm:$0xff]
        %v1165 = vld [vmem:[%s278 + $0x478] sm:$0xff]
        %v1166 = vld [vmem:[%s278 + $0x480] sm:$0xff]
        %v1167 = vld [vmem:[%s278 + $0x488] sm:$0xff]
        %v1168 = vld [vmem:[%s278 + $0x490] sm:$0xff]
        %v1169 = vld [vmem:[%s278 + $0x498] sm:$0xff]
        %v1170 = vld [vmem:[%s278 + $0x4a0] sm:$0xff]
        %v1171 = vld [vmem:[%s278 + $0x4a8] sm:$0xff]
        %v1172 = vld [vmem:[%s278 + $0x4b0] sm:$0xff]
        %v1173 = vld [vmem:[%s278 + $0x4b8] sm:$0xff]
        %v1174 = vld [vmem:[%s278 + $0x4c0] sm:$0xff]
        %v1175 = vld [vmem:[%s278 + $0x4c8] sm:$0xff]
        %v1176 = vld [vmem:[%s278 + $0x4d0] sm:$0xff]
        %v1177 = vld [vmem:[%s278 + $0x4d8] sm:$0xff]
        %v1178 = vld [vmem:[%s278 + $0x4e0] sm:$0xff]
        %v1179 = vld [vmem:[%s278 + $0x4e8] sm:$0xff]
        %v1180 = vld [vmem:[%s278 + $0x4f0] sm:$0xff]
        %v1181 = vld [vmem:[%s278 + $0x4f8] sm:$0xff]
        %v1182 = vld [vmem:[%s278 + $0x500] sm:$0xff]
        %v1183 = vld [vmem:[%s278 + $0x508] sm:$0xff]
        %v1184 = vld [vmem:[%s278 + $0x510] sm:$0xff]
        %v1185 = vld [vmem:[%s278 + $0x518] sm:$0xff]
        %v1186 = vld [vmem:[%s278 + $0x520] sm:$0xff]
        %v1187 = vld [vmem:[%s278 + $0x528] sm:$0xff]
        %v1188 = vld [vmem:[%s278 + $0x530] sm:$0xff]
        %v1189 = vld [vmem:[%s278 + $0x538] sm:$0xff]
        %v1190 = vld [vmem:[%s278 + $0x540] sm:$0xff]
        %v1191 = vld [vmem:[%s278 + $0x548] sm:$0xff]
        %v1192 = vld [vmem:[%s278 + $0x550] sm:$0xff]
        %v1193 = vld [vmem:[%s278 + $0x558] sm:$0xff]
        %v1194 = vld [vmem:[%s278 + $0x560] sm:$0xff]
        %v1195 = vld [vmem:[%s278 + $0x568] sm:$0xff]
        %v1196 = vld [vmem:[%s278 + $0x570] sm:$0xff]
        %v1197 = vld [vmem:[%s278 + $0x578] sm:$0xff]
        %v1198 = vld [vmem:[%s278 + $0x580] sm:$0xff]
        %v1199 = vld [vmem:[%s278 + $0x588] sm:$0xff]
        %v1200 = vld [vmem:[%s278 + $0x590] sm:$0xff]
        %v1201 = vld [vmem:[%s278 + $0x598] sm:$0xff]
        %v1202 = vld [vmem:[%s278 + $0x5a0] sm:$0xff]
        %v1203 = vld [vmem:[%s278 + $0x5a8] sm:$0xff]
        %v1204 = vld [vmem:[%s278 + $0x5b0] sm:$0xff]
        %v1205 = vld [vmem:[%s278 + $0x5b8] sm:$0xff]
        %v1206 = vld [vmem:[%s278 + $0x5c0] sm:$0xff]
        %v1207 = vld [vmem:[%s278 + $0x5c8] sm:$0xff]
        %v1208 = vld [vmem:[%s278 + $0x5d0] sm:$0xff]
        %v1209 = vld [vmem:[%s278 + $0x5d8] sm:$0xff]
        %v1210 = vld [vmem:[%s278 + $0x5e0] sm:$0xff]
        %v1211 = vld [vmem:[%s278 + $0x5e8] sm:$0xff]
        %v1212 = vld [vmem:[%s278 + $0x5f0] sm:$0xff]
        %v1213 = vld [vmem:[%s278 + $0x5f8] sm:$0xff]
        %v1214 = vld [vmem:[%s278 + $0x600] sm:$0xff]
        %v1215 = vld [vmem:[%s278 + $0x608] sm:$0xff]
        %v1216 = vld [vmem:[%s278 + $0x610] sm:$0xff]
        %v1217 = vld [vmem:[%s278 + $0x618] sm:$0xff]
        %v1218 = vld [vmem:[%s278 + $0x620] sm:$0xff]
        %v1219 = vld [vmem:[%s278 + $0x628] sm:$0xff]
        %v1220 = vld [vmem:[%s278 + $0x630] sm:$0xff]
        %v1221 = vld [vmem:[%s278 + $0x638] sm:$0xff]
        %v1222 = vld [vmem:[%s278 + $0x640] sm:$0xff]
        %v1223 = vld [vmem:[%s278 + $0x648] sm:$0xff]
        %v1224 = vld [vmem:[%s278 + $0x650] sm:$0xff]
        %v1225 = vld [vmem:[%s278 + $0x658] sm:$0xff]
        %v1226 = vld [vmem:[%s278 + $0x660] sm:$0xff]
        %v1227 = vld [vmem:[%s278 + $0x668] sm:$0xff]
        %v1228 = vld [vmem:[%s278 + $0x670] sm:$0xff]
        %v1229 = vld [vmem:[%s278 + $0x678] sm:$0xff]
        %v1230 = vld [vmem:[%s278 + $0x680] sm:$0xff]
        %v1231 = vld [vmem:[%s278 + $0x688] sm:$0xff]
        %v1232 = vld [vmem:[%s278 + $0x690] sm:$0xff]
        %v1233 = vld [vmem:[%s278 + $0x698] sm:$0xff]
        %v1234 = vld [vmem:[%s278 + $0x6a0] sm:$0xff]
        %v1235 = vld [vmem:[%s278 + $0x6a8] sm:$0xff]
        %v1236 = vld [vmem:[%s278 + $0x6b0] sm:$0xff]
        %v1237 = vld [vmem:[%s278 + $0x6b8] sm:$0xff]
        %v1238 = vld [vmem:[%s278 + $0x6c0] sm:$0xff]
        %v1239 = vld [vmem:[%s278 + $0x6c8] sm:$0xff]
        %v1240 = vld [vmem:[%s278 + $0x6d0] sm:$0xff]
        %v1241 = vld [vmem:[%s278 + $0x6d8] sm:$0xff]
        %v1242 = vld [vmem:[%s278 + $0x6e0] sm:$0xff]
        %v1243 = vld [vmem:[%s278 + $0x6e8] sm:$0xff]
        %v1244 = vld [vmem:[%s278 + $0x6f0] sm:$0xff]
        %v1245 = vld [vmem:[%s278 + $0x6f8] sm:$0xff]
        %v1246 = vld [vmem:[%s278 + $0x700] sm:$0xff]
        %v1247 = vld [vmem:[%s278 + $0x708] sm:$0xff]
        %v1248 = vld [vmem:[%s278 + $0x710] sm:$0xff]
        %v1249 = vld [vmem:[%s278 + $0x718] sm:$0xff]
        %v1250 = vld [vmem:[%s278 + $0x720] sm:$0xff]
        %v1251 = vld [vmem:[%s278 + $0x728] sm:$0xff]
        %v1252 = vld [vmem:[%s278 + $0x730] sm:$0xff]
        %v1253 = vld [vmem:[%s278 + $0x738] sm:$0xff]
        %v1254 = vld [vmem:[%s278 + $0x740] sm:$0xff]
        %v1255 = vld [vmem:[%s278 + $0x748] sm:$0xff]
        %v1256 = vld [vmem:[%s278 + $0x750] sm:$0xff]
        %v1257 = vld [vmem:[%s278 + $0x758] sm:$0xff]
        %v1258 = vld [vmem:[%s278 + $0x760] sm:$0xff]
        %v1259 = vld [vmem:[%s278 + $0x768] sm:$0xff]
        %v1260 = vld [vmem:[%s278 + $0x770] sm:$0xff]
        %v1261 = vld [vmem:[%s278 + $0x778] sm:$0xff]
        %v1262 = vld [vmem:[%s278 + $0x780] sm:$0xff]
        %v1263 = vld [vmem:[%s278 + $0x788] sm:$0xff]
        %v1264 = vld [vmem:[%s278 + $0x790] sm:$0xff]
        %v1265 = vld [vmem:[%s278 + $0x798] sm:$0xff]
        %v1266 = vld [vmem:[%s278 + $0x7a0] sm:$0xff]
        %v1267 = vld [vmem:[%s278 + $0x7a8] sm:$0xff]
        %v1268 = vld [vmem:[%s278 + $0x7b0] sm:$0xff]
        %v1269 = vld [vmem:[%s278 + $0x7b8] sm:$0xff]
        %v1270 = vld [vmem:[%s278 + $0x7c0] sm:$0xff]
        %v1271 = vld [vmem:[%s278 + $0x7c8] sm:$0xff]
        %v1272 = vld [vmem:[%s278 + $0x7d0] sm:$0xff]
        %v1273 = vld [vmem:[%s278 + $0x7d8] sm:$0xff]
        %v1274 = vld [vmem:[%s278 + $0x7e0] sm:$0xff]
        %v1275 = vld [vmem:[%s278 + $0x7e8] sm:$0xff]
        %v1276 = vld [vmem:[%s278 + $0x7f0] sm:$0xff]
        %v1277 = vld [vmem:[%s278 + $0x7f8] sm:$0xff]
        %v1278 = vld [vmem:[%s339] ss:$4 sm:$0xf]
        %v1280 = vlaneseq
        %v1281 = vshrl.u32 %v1280, 7
        %v1282 = vsub.s32 0, %v1281
        %v1283 = vrot.slane %v1278, %v1282
        %v1284 = vlaneseq
        %v1285 = vshrl.u32 %v1284, 7
        %v1286 = vsub.s32 1, %v1285
        %v1287 = vrot.slane %v1278, %v1286
        %v1288 = vlaneseq
        %v1289 = vshrl.u32 %v1288, 7
        %v1290 = vsub.s32 2, %v1289
        %v1291 = vrot.slane %v1278, %v1290
        %v1292 = vlaneseq
        %v1293 = vshrl.u32 %v1292, 7
        %v1294 = vsub.s32 3, %v1293
        %v1295 = vrot.slane %v1278, %v1294
        %v1556 = vunpack.c.l.b16 %v1022
        %v1557 = vunpack.c.h.b16 %v1022
        %v1558 = vunpack.c.l.b16 %v1023
        %v1559 = vunpack.c.h.b16 %v1023
        %v1560 = vunpack.c.l.b16 %v1024
        %v1561 = vunpack.c.h.b16 %v1024
        %v1562 = vunpack.c.l.b16 %v1025
        %v1563 = vunpack.c.h.b16 %v1025
        %v1564 = vunpack.c.l.b16 %v1026
        %v1565 = vunpack.c.h.b16 %v1026
        %v1566 = vunpack.c.l.b16 %v1027
        %v1567 = vunpack.c.h.b16 %v1027
        %v1568 = vunpack.c.l.b16 %v1028
        %v1569 = vunpack.c.h.b16 %v1028
        %v1570 = vunpack.c.l.b16 %v1029
        %v1571 = vunpack.c.h.b16 %v1029
        %v1572 = vunpack.c.l.b16 %v1030
        %v1573 = vunpack.c.h.b16 %v1030
        %v1574 = vunpack.c.l.b16 %v1031
        %v1575 = vunpack.c.h.b16 %v1031
        %v1576 = vunpack.c.l.b16 %v1032
        %v1577 = vunpack.c.h.b16 %v1032
        %v1578 = vunpack.c.l.b16 %v1033
        %v1579 = vunpack.c.h.b16 %v1033
        %v1580 = vunpack.c.l.b16 %v1034
        %v1581 = vunpack.c.h.b16 %v1034
        %v1582 = vunpack.c.l.b16 %v1035
        %v1583 = vunpack.c.h.b16 %v1035
        %v1584 = vunpack.c.l.b16 %v1036
        %v1585 = vunpack.c.h.b16 %v1036
        %v1586 = vunpack.c.l.b16 %v1037
        %v1587 = vunpack.c.h.b16 %v1037
        %v1588 = vunpack.c.l.b16 %v1038
        %v1589 = vunpack.c.h.b16 %v1038
        %v1590 = vunpack.c.l.b16 %v1039
        %v1591 = vunpack.c.h.b16 %v1039
        %v1592 = vunpack.c.l.b16 %v1040
        %v1593 = vunpack.c.h.b16 %v1040
        %v1594 = vunpack.c.l.b16 %v1041
        %v1595 = vunpack.c.h.b16 %v1041
        %v1596 = vunpack.c.l.b16 %v1042
        %v1597 = vunpack.c.h.b16 %v1042
        %v1598 = vunpack.c.l.b16 %v1043
        %v1599 = vunpack.c.h.b16 %v1043
        %v1600 = vunpack.c.l.b16 %v1044
        %v1601 = vunpack.c.h.b16 %v1044
        %v1602 = vunpack.c.l.b16 %v1045
        %v1603 = vunpack.c.h.b16 %v1045
        %v1604 = vunpack.c.l.b16 %v1046
        %v1605 = vunpack.c.h.b16 %v1046
        %v1606 = vunpack.c.l.b16 %v1047
        %v1607 = vunpack.c.h.b16 %v1047
        %v1608 = vunpack.c.l.b16 %v1048
        %v1609 = vunpack.c.h.b16 %v1048
        %v1610 = vunpack.c.l.b16 %v1049
        %v1611 = vunpack.c.h.b16 %v1049
        %v1612 = vunpack.c.l.b16 %v1050
        %v1613 = vunpack.c.h.b16 %v1050
        %v1614 = vunpack.c.l.b16 %v1051
        %v1615 = vunpack.c.h.b16 %v1051
        %v1616 = vunpack.c.l.b16 %v1052
        %v1617 = vunpack.c.h.b16 %v1052
        %v1618 = vunpack.c.l.b16 %v1053
        %v1619 = vunpack.c.h.b16 %v1053
        %v1620 = vunpack.c.l.b16 %v1054
        %v1621 = vunpack.c.h.b16 %v1054
        %v1622 = vunpack.c.l.b16 %v1055
        %v1623 = vunpack.c.h.b16 %v1055
        %v1624 = vunpack.c.l.b16 %v1056
        %v1625 = vunpack.c.h.b16 %v1056
        %v1626 = vunpack.c.l.b16 %v1057
        %v1627 = vunpack.c.h.b16 %v1057
        %v1628 = vunpack.c.l.b16 %v1058
        %v1629 = vunpack.c.h.b16 %v1058
        %v1630 = vunpack.c.l.b16 %v1059
        %v1631 = vunpack.c.h.b16 %v1059
        %v1632 = vunpack.c.l.b16 %v1060
        %v1633 = vunpack.c.h.b16 %v1060
        %v1634 = vunpack.c.l.b16 %v1061
        %v1635 = vunpack.c.h.b16 %v1061
        %v1636 = vunpack.c.l.b16 %v1062
        %v1637 = vunpack.c.h.b16 %v1062
        %v1638 = vunpack.c.l.b16 %v1063
        %v1639 = vunpack.c.h.b16 %v1063
        %v1640 = vunpack.c.l.b16 %v1064
        %v1641 = vunpack.c.h.b16 %v1064
        %v1642 = vunpack.c.l.b16 %v1065
        %v1643 = vunpack.c.h.b16 %v1065
        %v1644 = vunpack.c.l.b16 %v1066
        %v1645 = vunpack.c.h.b16 %v1066
        %v1646 = vunpack.c.l.b16 %v1067
        %v1647 = vunpack.c.h.b16 %v1067
        %v1648 = vunpack.c.l.b16 %v1068
        %v1649 = vunpack.c.h.b16 %v1068
        %v1650 = vunpack.c.l.b16 %v1069
        %v1651 = vunpack.c.h.b16 %v1069
        %v1652 = vunpack.c.l.b16 %v1070
        %v1653 = vunpack.c.h.b16 %v1070
        %v1654 = vunpack.c.l.b16 %v1071
        %v1655 = vunpack.c.h.b16 %v1071
        %v1656 = vunpack.c.l.b16 %v1072
        %v1657 = vunpack.c.h.b16 %v1072
        %v1658 = vunpack.c.l.b16 %v1073
        %v1659 = vunpack.c.h.b16 %v1073
        %v1660 = vunpack.c.l.b16 %v1074
        %v1661 = vunpack.c.h.b16 %v1074
        %v1662 = vunpack.c.l.b16 %v1075
        %v1663 = vunpack.c.h.b16 %v1075
        %v1664 = vunpack.c.l.b16 %v1076
        %v1665 = vunpack.c.h.b16 %v1076
        %v1666 = vunpack.c.l.b16 %v1077
        %v1667 = vunpack.c.h.b16 %v1077
        %v1668 = vunpack.c.l.b16 %v1078
        %v1669 = vunpack.c.h.b16 %v1078
        %v1670 = vunpack.c.l.b16 %v1079
        %v1671 = vunpack.c.h.b16 %v1079
        %v1672 = vunpack.c.l.b16 %v1080
        %v1673 = vunpack.c.h.b16 %v1080
        %v1674 = vunpack.c.l.b16 %v1081
        %v1675 = vunpack.c.h.b16 %v1081
        %v1676 = vunpack.c.l.b16 %v1082
        %v1677 = vunpack.c.h.b16 %v1082
        %v1678 = vunpack.c.l.b16 %v1083
        %v1679 = vunpack.c.h.b16 %v1083
        %v1680 = vunpack.c.l.b16 %v1084
        %v1681 = vunpack.c.h.b16 %v1084
        %v1682 = vunpack.c.l.b16 %v1085
        %v1683 = vunpack.c.h.b16 %v1085
        %v1684 = vunpack.c.l.b16 %v1086
        %v1685 = vunpack.c.h.b16 %v1086
        %v1686 = vunpack.c.l.b16 %v1087
        %v1687 = vunpack.c.h.b16 %v1087
        %v1688 = vunpack.c.l.b16 %v1088
        %v1689 = vunpack.c.h.b16 %v1088
        %v1690 = vunpack.c.l.b16 %v1089
        %v1691 = vunpack.c.h.b16 %v1089
        %v1692 = vunpack.c.l.b16 %v1090
        %v1693 = vunpack.c.h.b16 %v1090
        %v1694 = vunpack.c.l.b16 %v1091
        %v1695 = vunpack.c.h.b16 %v1091
        %v1696 = vunpack.c.l.b16 %v1092
        %v1697 = vunpack.c.h.b16 %v1092
        %v1698 = vunpack.c.l.b16 %v1093
        %v1699 = vunpack.c.h.b16 %v1093
        %v1700 = vunpack.c.l.b16 %v1094
        %v1701 = vunpack.c.h.b16 %v1094
        %v1702 = vunpack.c.l.b16 %v1095
        %v1703 = vunpack.c.h.b16 %v1095
        %v1704 = vunpack.c.l.b16 %v1096
        %v1705 = vunpack.c.h.b16 %v1096
        %v1706 = vunpack.c.l.b16 %v1097
        %v1707 = vunpack.c.h.b16 %v1097
        %v1708 = vunpack.c.l.b16 %v1098
        %v1709 = vunpack.c.h.b16 %v1098
        %v1710 = vunpack.c.l.b16 %v1099
        %v1711 = vunpack.c.h.b16 %v1099
        %v1712 = vunpack.c.l.b16 %v1100
        %v1713 = vunpack.c.h.b16 %v1100
        %v1714 = vunpack.c.l.b16 %v1101
        %v1715 = vunpack.c.h.b16 %v1101
        %v1716 = vunpack.c.l.b16 %v1102
        %v1717 = vunpack.c.h.b16 %v1102
        %v1718 = vunpack.c.l.b16 %v1103
        %v1719 = vunpack.c.h.b16 %v1103
        %v1720 = vunpack.c.l.b16 %v1104
        %v1721 = vunpack.c.h.b16 %v1104
        %v1722 = vunpack.c.l.b16 %v1105
        %v1723 = vunpack.c.h.b16 %v1105
        %v1724 = vunpack.c.l.b16 %v1106
        %v1725 = vunpack.c.h.b16 %v1106
        %v1726 = vunpack.c.l.b16 %v1107
        %v1727 = vunpack.c.h.b16 %v1107
        %v1728 = vunpack.c.l.b16 %v1108
        %v1729 = vunpack.c.h.b16 %v1108
        %v1730 = vunpack.c.l.b16 %v1109
        %v1731 = vunpack.c.h.b16 %v1109
        %v1732 = vunpack.c.l.b16 %v1110
        %v1733 = vunpack.c.h.b16 %v1110
        %v1734 = vunpack.c.l.b16 %v1111
        %v1735 = vunpack.c.h.b16 %v1111
        %v1736 = vunpack.c.l.b16 %v1112
        %v1737 = vunpack.c.h.b16 %v1112
        %v1738 = vunpack.c.l.b16 %v1113
        %v1739 = vunpack.c.h.b16 %v1113
        %v1740 = vunpack.c.l.b16 %v1114
        %v1741 = vunpack.c.h.b16 %v1114
        %v1742 = vunpack.c.l.b16 %v1115
        %v1743 = vunpack.c.h.b16 %v1115
        %v1744 = vunpack.c.l.b16 %v1116
        %v1745 = vunpack.c.h.b16 %v1116
        %v1746 = vunpack.c.l.b16 %v1117
        %v1747 = vunpack.c.h.b16 %v1117
        %v1748 = vunpack.c.l.b16 %v1118
        %v1749 = vunpack.c.h.b16 %v1118
        %v1750 = vunpack.c.l.b16 %v1119
        %v1751 = vunpack.c.h.b16 %v1119
        %v1752 = vunpack.c.l.b16 %v1120
        %v1753 = vunpack.c.h.b16 %v1120
        %v1754 = vunpack.c.l.b16 %v1121
        %v1755 = vunpack.c.h.b16 %v1121
        %v1756 = vunpack.c.l.b16 %v1122
        %v1757 = vunpack.c.h.b16 %v1122
        %v1758 = vunpack.c.l.b16 %v1123
        %v1759 = vunpack.c.h.b16 %v1123
        %v1760 = vunpack.c.l.b16 %v1124
        %v1761 = vunpack.c.h.b16 %v1124
        %v1762 = vunpack.c.l.b16 %v1125
        %v1763 = vunpack.c.h.b16 %v1125
        %v1764 = vunpack.c.l.b16 %v1126
        %v1765 = vunpack.c.h.b16 %v1126
        %v1766 = vunpack.c.l.b16 %v1127
        %v1767 = vunpack.c.h.b16 %v1127
        %v1768 = vunpack.c.l.b16 %v1128
        %v1769 = vunpack.c.h.b16 %v1128
        %v1770 = vunpack.c.l.b16 %v1129
        %v1771 = vunpack.c.h.b16 %v1129
        %v1772 = vunpack.c.l.b16 %v1130
        %v1773 = vunpack.c.h.b16 %v1130
        %v1774 = vunpack.c.l.b16 %v1131
        %v1775 = vunpack.c.h.b16 %v1131
        %v1776 = vunpack.c.l.b16 %v1132
        %v1777 = vunpack.c.h.b16 %v1132
        %v1778 = vunpack.c.l.b16 %v1133
        %v1779 = vunpack.c.h.b16 %v1133
        %v1780 = vunpack.c.l.b16 %v1134
        %v1781 = vunpack.c.h.b16 %v1134
        %v1782 = vunpack.c.l.b16 %v1135
        %v1783 = vunpack.c.h.b16 %v1135
        %v1784 = vunpack.c.l.b16 %v1136
        %v1785 = vunpack.c.h.b16 %v1136
        %v1786 = vunpack.c.l.b16 %v1137
        %v1787 = vunpack.c.h.b16 %v1137
        %v1788 = vunpack.c.l.b16 %v1138
        %v1789 = vunpack.c.h.b16 %v1138
        %v1790 = vunpack.c.l.b16 %v1139
        %v1791 = vunpack.c.h.b16 %v1139
        %v1792 = vunpack.c.l.b16 %v1140
        %v1793 = vunpack.c.h.b16 %v1140
        %v1794 = vunpack.c.l.b16 %v1141
        %v1795 = vunpack.c.h.b16 %v1141
        %v1796 = vunpack.c.l.b16 %v1142
        %v1797 = vunpack.c.h.b16 %v1142
        %v1798 = vunpack.c.l.b16 %v1143
        %v1799 = vunpack.c.h.b16 %v1143
        %v1800 = vunpack.c.l.b16 %v1144
        %v1801 = vunpack.c.h.b16 %v1144
        %v1802 = vunpack.c.l.b16 %v1145
        %v1803 = vunpack.c.h.b16 %v1145
        %v1804 = vunpack.c.l.b16 %v1146
        %v1805 = vunpack.c.h.b16 %v1146
        %v1806 = vunpack.c.l.b16 %v1147
        %v1807 = vunpack.c.h.b16 %v1147
        %v1808 = vunpack.c.l.b16 %v1148
        %v1809 = vunpack.c.h.b16 %v1148
        %v1810 = vunpack.c.l.b16 %v1149
        %v1811 = vunpack.c.h.b16 %v1149
        %v1812 = vunpack.c.l.b16 %v1150
        %v1813 = vunpack.c.h.b16 %v1150
        %v1814 = vunpack.c.l.b16 %v1151
        %v1815 = vunpack.c.h.b16 %v1151
        %v1816 = vunpack.c.l.b16 %v1152
        %v1817 = vunpack.c.h.b16 %v1152
        %v1818 = vunpack.c.l.b16 %v1153
        %v1819 = vunpack.c.h.b16 %v1153
        %v1820 = vunpack.c.l.b16 %v1154
        %v1821 = vunpack.c.h.b16 %v1154
        %v1822 = vunpack.c.l.b16 %v1155
        %v1823 = vunpack.c.h.b16 %v1155
        %v1824 = vunpack.c.l.b16 %v1156
        %v1825 = vunpack.c.h.b16 %v1156
        %v1826 = vunpack.c.l.b16 %v1157
        %v1827 = vunpack.c.h.b16 %v1157
        %v1828 = vunpack.c.l.b16 %v1158
        %v1829 = vunpack.c.h.b16 %v1158
        %v1830 = vunpack.c.l.b16 %v1159
        %v1831 = vunpack.c.h.b16 %v1159
        %v1832 = vunpack.c.l.b16 %v1160
        %v1833 = vunpack.c.h.b16 %v1160
        %v1834 = vunpack.c.l.b16 %v1161
        %v1835 = vunpack.c.h.b16 %v1161
        %v1836 = vunpack.c.l.b16 %v1162
        %v1837 = vunpack.c.h.b16 %v1162
        %v1838 = vunpack.c.l.b16 %v1163
        %v1839 = vunpack.c.h.b16 %v1163
        %v1840 = vunpack.c.l.b16 %v1164
        %v1841 = vunpack.c.h.b16 %v1164
        %v1842 = vunpack.c.l.b16 %v1165
        %v1843 = vunpack.c.h.b16 %v1165
        %v1844 = vunpack.c.l.b16 %v1166
        %v1845 = vunpack.c.h.b16 %v1166
        %v1846 = vunpack.c.l.b16 %v1167
        %v1847 = vunpack.c.h.b16 %v1167
        %v1848 = vunpack.c.l.b16 %v1168
        %v1849 = vunpack.c.h.b16 %v1168
        %v1850 = vunpack.c.l.b16 %v1169
        %v1851 = vunpack.c.h.b16 %v1169
        %v1852 = vunpack.c.l.b16 %v1170
        %v1853 = vunpack.c.h.b16 %v1170
        %v1854 = vunpack.c.l.b16 %v1171
        %v1855 = vunpack.c.h.b16 %v1171
        %v1856 = vunpack.c.l.b16 %v1172
        %v1857 = vunpack.c.h.b16 %v1172
        %v1858 = vunpack.c.l.b16 %v1173
        %v1859 = vunpack.c.h.b16 %v1173
        %v1860 = vunpack.c.l.b16 %v1174
        %v1861 = vunpack.c.h.b16 %v1174
        %v1862 = vunpack.c.l.b16 %v1175
        %v1863 = vunpack.c.h.b16 %v1175
        %v1864 = vunpack.c.l.b16 %v1176
        %v1865 = vunpack.c.h.b16 %v1176
        %v1866 = vunpack.c.l.b16 %v1177
        %v1867 = vunpack.c.h.b16 %v1177
        %v1868 = vunpack.c.l.b16 %v1178
        %v1869 = vunpack.c.h.b16 %v1178
        %v1870 = vunpack.c.l.b16 %v1179
        %v1871 = vunpack.c.h.b16 %v1179
        %v1872 = vunpack.c.l.b16 %v1180
        %v1873 = vunpack.c.h.b16 %v1180
        %v1874 = vunpack.c.l.b16 %v1181
        %v1875 = vunpack.c.h.b16 %v1181
        %v1876 = vunpack.c.l.b16 %v1182
        %v1877 = vunpack.c.h.b16 %v1182
        %v1878 = vunpack.c.l.b16 %v1183
        %v1879 = vunpack.c.h.b16 %v1183
        %v1880 = vunpack.c.l.b16 %v1184
        %v1881 = vunpack.c.h.b16 %v1184
        %v1882 = vunpack.c.l.b16 %v1185
        %v1883 = vunpack.c.h.b16 %v1185
        %v1884 = vunpack.c.l.b16 %v1186
        %v1885 = vunpack.c.h.b16 %v1186
        %v1886 = vunpack.c.l.b16 %v1187
        %v1887 = vunpack.c.h.b16 %v1187
        %v1888 = vunpack.c.l.b16 %v1188
        %v1889 = vunpack.c.h.b16 %v1188
        %v1890 = vunpack.c.l.b16 %v1189
        %v1891 = vunpack.c.h.b16 %v1189
        %v1892 = vunpack.c.l.b16 %v1190
        %v1893 = vunpack.c.h.b16 %v1190
        %v1894 = vunpack.c.l.b16 %v1191
        %v1895 = vunpack.c.h.b16 %v1191
        %v1896 = vunpack.c.l.b16 %v1192
        %v1897 = vunpack.c.h.b16 %v1192
        %v1898 = vunpack.c.l.b16 %v1193
        %v1899 = vunpack.c.h.b16 %v1193
        %v1900 = vunpack.c.l.b16 %v1194
        %v1901 = vunpack.c.h.b16 %v1194
        %v1902 = vunpack.c.l.b16 %v1195
        %v1903 = vunpack.c.h.b16 %v1195
        %v1904 = vunpack.c.l.b16 %v1196
        %v1905 = vunpack.c.h.b16 %v1196
        %v1906 = vunpack.c.l.b16 %v1197
        %v1907 = vunpack.c.h.b16 %v1197
        %v1908 = vunpack.c.l.b16 %v1198
        %v1909 = vunpack.c.h.b16 %v1198
        %v1910 = vunpack.c.l.b16 %v1199
        %v1911 = vunpack.c.h.b16 %v1199
        %v1912 = vunpack.c.l.b16 %v1200
        %v1913 = vunpack.c.h.b16 %v1200
        %v1914 = vunpack.c.l.b16 %v1201
        %v1915 = vunpack.c.h.b16 %v1201
        %v1916 = vunpack.c.l.b16 %v1202
        %v1917 = vunpack.c.h.b16 %v1202
        %v1918 = vunpack.c.l.b16 %v1203
        %v1919 = vunpack.c.h.b16 %v1203
        %v1920 = vunpack.c.l.b16 %v1204
        %v1921 = vunpack.c.h.b16 %v1204
        %v1922 = vunpack.c.l.b16 %v1205
        %v1923 = vunpack.c.h.b16 %v1205
        %v1924 = vunpack.c.l.b16 %v1206
        %v1925 = vunpack.c.h.b16 %v1206
        %v1926 = vunpack.c.l.b16 %v1207
        %v1927 = vunpack.c.h.b16 %v1207
        %v1928 = vunpack.c.l.b16 %v1208
        %v1929 = vunpack.c.h.b16 %v1208
        %v1930 = vunpack.c.l.b16 %v1209
        %v1931 = vunpack.c.h.b16 %v1209
        %v1932 = vunpack.c.l.b16 %v1210
        %v1933 = vunpack.c.h.b16 %v1210
        %v1934 = vunpack.c.l.b16 %v1211
        %v1935 = vunpack.c.h.b16 %v1211
        %v1936 = vunpack.c.l.b16 %v1212
        %v1937 = vunpack.c.h.b16 %v1212
        %v1938 = vunpack.c.l.b16 %v1213
        %v1939 = vunpack.c.h.b16 %v1213
        %v1940 = vunpack.c.l.b16 %v1214
        %v1941 = vunpack.c.h.b16 %v1214
        %v1942 = vunpack.c.l.b16 %v1215
        %v1943 = vunpack.c.h.b16 %v1215
        %v1944 = vunpack.c.l.b16 %v1216
        %v1945 = vunpack.c.h.b16 %v1216
        %v1946 = vunpack.c.l.b16 %v1217
        %v1947 = vunpack.c.h.b16 %v1217
        %v1948 = vunpack.c.l.b16 %v1218
        %v1949 = vunpack.c.h.b16 %v1218
        %v1950 = vunpack.c.l.b16 %v1219
        %v1951 = vunpack.c.h.b16 %v1219
        %v1952 = vunpack.c.l.b16 %v1220
        %v1953 = vunpack.c.h.b16 %v1220
        %v1954 = vunpack.c.l.b16 %v1221
        %v1955 = vunpack.c.h.b16 %v1221
        %v1956 = vunpack.c.l.b16 %v1222
        %v1957 = vunpack.c.h.b16 %v1222
        %v1958 = vunpack.c.l.b16 %v1223
        %v1959 = vunpack.c.h.b16 %v1223
        %v1960 = vunpack.c.l.b16 %v1224
        %v1961 = vunpack.c.h.b16 %v1224
        %v1962 = vunpack.c.l.b16 %v1225
        %v1963 = vunpack.c.h.b16 %v1225
        %v1964 = vunpack.c.l.b16 %v1226
        %v1965 = vunpack.c.h.b16 %v1226
        %v1966 = vunpack.c.l.b16 %v1227
        %v1967 = vunpack.c.h.b16 %v1227
        %v1968 = vunpack.c.l.b16 %v1228
        %v1969 = vunpack.c.h.b16 %v1228
        %v1970 = vunpack.c.l.b16 %v1229
        %v1971 = vunpack.c.h.b16 %v1229
        %v1972 = vunpack.c.l.b16 %v1230
        %v1973 = vunpack.c.h.b16 %v1230
        %v1974 = vunpack.c.l.b16 %v1231
        %v1975 = vunpack.c.h.b16 %v1231
        %v1976 = vunpack.c.l.b16 %v1232
        %v1977 = vunpack.c.h.b16 %v1232
        %v1978 = vunpack.c.l.b16 %v1233
        %v1979 = vunpack.c.h.b16 %v1233
        %v1980 = vunpack.c.l.b16 %v1234
        %v1981 = vunpack.c.h.b16 %v1234
        %v1982 = vunpack.c.l.b16 %v1235
        %v1983 = vunpack.c.h.b16 %v1235
        %v1984 = vunpack.c.l.b16 %v1236
        %v1985 = vunpack.c.h.b16 %v1236
        %v1986 = vunpack.c.l.b16 %v1237
        %v1987 = vunpack.c.h.b16 %v1237
        %v1988 = vunpack.c.l.b16 %v1238
        %v1989 = vunpack.c.h.b16 %v1238
        %v1990 = vunpack.c.l.b16 %v1239
        %v1991 = vunpack.c.h.b16 %v1239
        %v1992 = vunpack.c.l.b16 %v1240
        %v1993 = vunpack.c.h.b16 %v1240
        %v1994 = vunpack.c.l.b16 %v1241
        %v1995 = vunpack.c.h.b16 %v1241
        %v1996 = vunpack.c.l.b16 %v1242
        %v1997 = vunpack.c.h.b16 %v1242
        %v1998 = vunpack.c.l.b16 %v1243
        %v1999 = vunpack.c.h.b16 %v1243
        %v2000 = vunpack.c.l.b16 %v1244
        %v2001 = vunpack.c.h.b16 %v1244
        %v2002 = vunpack.c.l.b16 %v1245
        %v2003 = vunpack.c.h.b16 %v1245
        %v2004 = vunpack.c.l.b16 %v1246
        %v2005 = vunpack.c.h.b16 %v1246
        %v2006 = vunpack.c.l.b16 %v1247
        %v2007 = vunpack.c.h.b16 %v1247
        %v2008 = vunpack.c.l.b16 %v1248
        %v2009 = vunpack.c.h.b16 %v1248
        %v2010 = vunpack.c.l.b16 %v1249
        %v2011 = vunpack.c.h.b16 %v1249
        %v2012 = vunpack.c.l.b16 %v1250
        %v2013 = vunpack.c.h.b16 %v1250
        %v2014 = vunpack.c.l.b16 %v1251
        %v2015 = vunpack.c.h.b16 %v1251
        %v2016 = vunpack.c.l.b16 %v1252
        %v2017 = vunpack.c.h.b16 %v1252
        %v2018 = vunpack.c.l.b16 %v1253
        %v2019 = vunpack.c.h.b16 %v1253
        %v2020 = vunpack.c.l.b16 %v1254
        %v2021 = vunpack.c.h.b16 %v1254
        %v2022 = vunpack.c.l.b16 %v1255
        %v2023 = vunpack.c.h.b16 %v1255
        %v2024 = vunpack.c.l.b16 %v1256
        %v2025 = vunpack.c.h.b16 %v1256
        %v2026 = vunpack.c.l.b16 %v1257
        %v2027 = vunpack.c.h.b16 %v1257
        %v2028 = vunpack.c.l.b16 %v1258
        %v2029 = vunpack.c.h.b16 %v1258
        %v2030 = vunpack.c.l.b16 %v1259
        %v2031 = vunpack.c.h.b16 %v1259
        %v2032 = vunpack.c.l.b16 %v1260
        %v2033 = vunpack.c.h.b16 %v1260
        %v2034 = vunpack.c.l.b16 %v1261
        %v2035 = vunpack.c.h.b16 %v1261
        %v2036 = vunpack.c.l.b16 %v1262
        %v2037 = vunpack.c.h.b16 %v1262
        %v2038 = vunpack.c.l.b16 %v1263
        %v2039 = vunpack.c.h.b16 %v1263
        %v2040 = vunpack.c.l.b16 %v1264
        %v2041 = vunpack.c.h.b16 %v1264
        %v2042 = vunpack.c.l.b16 %v1265
        %v2043 = vunpack.c.h.b16 %v1265
        %v2044 = vunpack.c.l.b16 %v1266
        %v2045 = vunpack.c.h.b16 %v1266
        %v2046 = vunpack.c.l.b16 %v1267
        %v2047 = vunpack.c.h.b16 %v1267
        %v2048 = vunpack.c.l.b16 %v1268
        %v2049 = vunpack.c.h.b16 %v1268
        %v2050 = vunpack.c.l.b16 %v1269
        %v2051 = vunpack.c.h.b16 %v1269
        %v2052 = vunpack.c.l.b16 %v1270
        %v2053 = vunpack.c.h.b16 %v1270
        %v2054 = vunpack.c.l.b16 %v1271
        %v2055 = vunpack.c.h.b16 %v1271
        %v2056 = vunpack.c.l.b16 %v1272
        %v2057 = vunpack.c.h.b16 %v1272
        %v2058 = vunpack.c.l.b16 %v1273
        %v2059 = vunpack.c.h.b16 %v1273
        %v2060 = vunpack.c.l.b16 %v1274
        %v2061 = vunpack.c.h.b16 %v1274
        %v2062 = vunpack.c.l.b16 %v1275
        %v2063 = vunpack.c.h.b16 %v1275
        %v2064 = vunpack.c.l.b16 %v1276
        %v2065 = vunpack.c.h.b16 %v1276
        %v2066 = vunpack.c.l.b16 %v1277
        %v2067 = vunpack.c.h.b16 %v1277
        %v2068 = vpack.c.b16 %v1560, %v1556
        %v2069 = vpack.c.b16 %v1561, %v1557
        %v2070 = vpack.c.b16 %v1562, %v1558
        %v2071 = vpack.c.b16 %v1563, %v1559
        %v2072 = vpack.c.b16 %v1568, %v1564
        %v2073 = vpack.c.b16 %v1569, %v1565
        %v2074 = vpack.c.b16 %v1570, %v1566
        %v2075 = vpack.c.b16 %v1571, %v1567
        %v2076 = vpack.c.b16 %v1576, %v1572
        %v2077 = vpack.c.b16 %v1577, %v1573
        %v2078 = vpack.c.b16 %v1578, %v1574
        %v2079 = vpack.c.b16 %v1579, %v1575
        %v2080 = vpack.c.b16 %v1584, %v1580
        %v2081 = vpack.c.b16 %v1585, %v1581
        %v2082 = vpack.c.b16 %v1586, %v1582
        %v2083 = vpack.c.b16 %v1587, %v1583
        %v2084 = vpack.c.b16 %v1592, %v1588
        %v2085 = vpack.c.b16 %v1593, %v1589
        %v2086 = vpack.c.b16 %v1594, %v1590
        %v2087 = vpack.c.b16 %v1595, %v1591
        %v2088 = vpack.c.b16 %v1600, %v1596
        %v2089 = vpack.c.b16 %v1601, %v1597
        %v2090 = vpack.c.b16 %v1602, %v1598
        %v2091 = vpack.c.b16 %v1603, %v1599
        %v2092 = vpack.c.b16 %v1608, %v1604
        %v2093 = vpack.c.b16 %v1609, %v1605
        %v2094 = vpack.c.b16 %v1610, %v1606
        %v2095 = vpack.c.b16 %v1611, %v1607
        %v2096 = vpack.c.b16 %v1616, %v1612
        %v2097 = vpack.c.b16 %v1617, %v1613
        %v2098 = vpack.c.b16 %v1618, %v1614
        %v2099 = vpack.c.b16 %v1619, %v1615
        %v2100 = vpack.c.b16 %v1624, %v1620
        %v2101 = vpack.c.b16 %v1625, %v1621
        %v2102 = vpack.c.b16 %v1626, %v1622
        %v2103 = vpack.c.b16 %v1627, %v1623
        %v2104 = vpack.c.b16 %v1632, %v1628
        %v2105 = vpack.c.b16 %v1633, %v1629
        %v2106 = vpack.c.b16 %v1634, %v1630
        %v2107 = vpack.c.b16 %v1635, %v1631
        %v2108 = vpack.c.b16 %v1640, %v1636
        %v2109 = vpack.c.b16 %v1641, %v1637
        %v2110 = vpack.c.b16 %v1642, %v1638
        %v2111 = vpack.c.b16 %v1643, %v1639
        %v2112 = vpack.c.b16 %v1648, %v1644
        %v2113 = vpack.c.b16 %v1649, %v1645
        %v2114 = vpack.c.b16 %v1650, %v1646
        %v2115 = vpack.c.b16 %v1651, %v1647
        %v2116 = vpack.c.b16 %v1656, %v1652
        %v2117 = vpack.c.b16 %v1657, %v1653
        %v2118 = vpack.c.b16 %v1658, %v1654
        %v2119 = vpack.c.b16 %v1659, %v1655
        %v2120 = vpack.c.b16 %v1664, %v1660
        %v2121 = vpack.c.b16 %v1665, %v1661
        %v2122 = vpack.c.b16 %v1666, %v1662
        %v2123 = vpack.c.b16 %v1667, %v1663
        %v2124 = vpack.c.b16 %v1672, %v1668
        %v2125 = vpack.c.b16 %v1673, %v1669
        %v2126 = vpack.c.b16 %v1674, %v1670
        %v2127 = vpack.c.b16 %v1675, %v1671
        %v2128 = vpack.c.b16 %v1680, %v1676
        %v2129 = vpack.c.b16 %v1681, %v1677
        %v2130 = vpack.c.b16 %v1682, %v1678
        %v2131 = vpack.c.b16 %v1683, %v1679
        %v2132 = vpack.c.b16 %v1688, %v1684
        %v2133 = vpack.c.b16 %v1689, %v1685
        %v2134 = vpack.c.b16 %v1690, %v1686
        %v2135 = vpack.c.b16 %v1691, %v1687
        %v2136 = vpack.c.b16 %v1696, %v1692
        %v2137 = vpack.c.b16 %v1697, %v1693
        %v2138 = vpack.c.b16 %v1698, %v1694
        %v2139 = vpack.c.b16 %v1699, %v1695
        %v2140 = vpack.c.b16 %v1704, %v1700
        %v2141 = vpack.c.b16 %v1705, %v1701
        %v2142 = vpack.c.b16 %v1706, %v1702
        %v2143 = vpack.c.b16 %v1707, %v1703
        %v2144 = vpack.c.b16 %v1712, %v1708
        %v2145 = vpack.c.b16 %v1713, %v1709
        %v2146 = vpack.c.b16 %v1714, %v1710
        %v2147 = vpack.c.b16 %v1715, %v1711
        %v2148 = vpack.c.b16 %v1720, %v1716
        %v2149 = vpack.c.b16 %v1721, %v1717
        %v2150 = vpack.c.b16 %v1722, %v1718
        %v2151 = vpack.c.b16 %v1723, %v1719
        %v2152 = vpack.c.b16 %v1728, %v1724
        %v2153 = vpack.c.b16 %v1729, %v1725
        %v2154 = vpack.c.b16 %v1730, %v1726
        %v2155 = vpack.c.b16 %v1731, %v1727
        %v2156 = vpack.c.b16 %v1736, %v1732
        %v2157 = vpack.c.b16 %v1737, %v1733
        %v2158 = vpack.c.b16 %v1738, %v1734
        %v2159 = vpack.c.b16 %v1739, %v1735
        %v2160 = vpack.c.b16 %v1744, %v1740
        %v2161 = vpack.c.b16 %v1745, %v1741
        %v2162 = vpack.c.b16 %v1746, %v1742
        %v2163 = vpack.c.b16 %v1747, %v1743
        %v2164 = vpack.c.b16 %v1752, %v1748
        %v2165 = vpack.c.b16 %v1753, %v1749
        %v2166 = vpack.c.b16 %v1754, %v1750
        %v2167 = vpack.c.b16 %v1755, %v1751
        %v2168 = vpack.c.b16 %v1760, %v1756
        %v2169 = vpack.c.b16 %v1761, %v1757
        %v2170 = vpack.c.b16 %v1762, %v1758
        %v2171 = vpack.c.b16 %v1763, %v1759
        %v2172 = vpack.c.b16 %v1768, %v1764
        %v2173 = vpack.c.b16 %v1769, %v1765
        %v2174 = vpack.c.b16 %v1770, %v1766
        %v2175 = vpack.c.b16 %v1771, %v1767
        %v2176 = vpack.c.b16 %v1776, %v1772
        %v2177 = vpack.c.b16 %v1777, %v1773
        %v2178 = vpack.c.b16 %v1778, %v1774
        %v2179 = vpack.c.b16 %v1779, %v1775
        %v2180 = vpack.c.b16 %v1784, %v1780
        %v2181 = vpack.c.b16 %v1785, %v1781
        %v2182 = vpack.c.b16 %v1786, %v1782
        %v2183 = vpack.c.b16 %v1787, %v1783
        %v2184 = vpack.c.b16 %v1792, %v1788
        %v2185 = vpack.c.b16 %v1793, %v1789
        %v2186 = vpack.c.b16 %v1794, %v1790
        %v2187 = vpack.c.b16 %v1795, %v1791
        %v2188 = vpack.c.b16 %v1800, %v1796
        %v2189 = vpack.c.b16 %v1801, %v1797
        %v2190 = vpack.c.b16 %v1802, %v1798
        %v2191 = vpack.c.b16 %v1803, %v1799
        %v2192 = vpack.c.b16 %v1808, %v1804
        %v2193 = vpack.c.b16 %v1809, %v1805
        %v2194 = vpack.c.b16 %v1810, %v1806
        %v2195 = vpack.c.b16 %v1811, %v1807
        %v2196 = vpack.c.b16 %v1816, %v1812
        %v2197 = vpack.c.b16 %v1817, %v1813
        %v2198 = vpack.c.b16 %v1818, %v1814
        %v2199 = vpack.c.b16 %v1819, %v1815
        %v2200 = vpack.c.b16 %v1824, %v1820
        %v2201 = vpack.c.b16 %v1825, %v1821
        %v2202 = vpack.c.b16 %v1826, %v1822
        %v2203 = vpack.c.b16 %v1827, %v1823
        %v2204 = vpack.c.b16 %v1832, %v1828
        %v2205 = vpack.c.b16 %v1833, %v1829
        %v2206 = vpack.c.b16 %v1834, %v1830
        %v2207 = vpack.c.b16 %v1835, %v1831
        %v2208 = vpack.c.b16 %v1840, %v1836
        %v2209 = vpack.c.b16 %v1841, %v1837
        %v2210 = vpack.c.b16 %v1842, %v1838
        %v2211 = vpack.c.b16 %v1843, %v1839
        %v2212 = vpack.c.b16 %v1848, %v1844
        %v2213 = vpack.c.b16 %v1849, %v1845
        %v2214 = vpack.c.b16 %v1850, %v1846
        %v2215 = vpack.c.b16 %v1851, %v1847
        %v2216 = vpack.c.b16 %v1856, %v1852
        %v2217 = vpack.c.b16 %v1857, %v1853
        %v2218 = vpack.c.b16 %v1858, %v1854
        %v2219 = vpack.c.b16 %v1859, %v1855
        %v2220 = vpack.c.b16 %v1864, %v1860
        %v2221 = vpack.c.b16 %v1865, %v1861
        %v2222 = vpack.c.b16 %v1866, %v1862
        %v2223 = vpack.c.b16 %v1867, %v1863
        %v2224 = vpack.c.b16 %v1872, %v1868
        %v2225 = vpack.c.b16 %v1873, %v1869
        %v2226 = vpack.c.b16 %v1874, %v1870
        %v2227 = vpack.c.b16 %v1875, %v1871
        %v2228 = vpack.c.b16 %v1880, %v1876
        %v2229 = vpack.c.b16 %v1881, %v1877
        %v2230 = vpack.c.b16 %v1882, %v1878
        %v2231 = vpack.c.b16 %v1883, %v1879
        %v2232 = vpack.c.b16 %v1888, %v1884
        %v2233 = vpack.c.b16 %v1889, %v1885
        %v2234 = vpack.c.b16 %v1890, %v1886
        %v2235 = vpack.c.b16 %v1891, %v1887
        %v2236 = vpack.c.b16 %v1896, %v1892
        %v2237 = vpack.c.b16 %v1897, %v1893
        %v2238 = vpack.c.b16 %v1898, %v1894
        %v2239 = vpack.c.b16 %v1899, %v1895
        %v2240 = vpack.c.b16 %v1904, %v1900
        %v2241 = vpack.c.b16 %v1905, %v1901
        %v2242 = vpack.c.b16 %v1906, %v1902
        %v2243 = vpack.c.b16 %v1907, %v1903
        %v2244 = vpack.c.b16 %v1912, %v1908
        %v2245 = vpack.c.b16 %v1913, %v1909
        %v2246 = vpack.c.b16 %v1914, %v1910
        %v2247 = vpack.c.b16 %v1915, %v1911
        %v2248 = vpack.c.b16 %v1920, %v1916
        %v2249 = vpack.c.b16 %v1921, %v1917
        %v2250 = vpack.c.b16 %v1922, %v1918
        %v2251 = vpack.c.b16 %v1923, %v1919
        %v2252 = vpack.c.b16 %v1928, %v1924
        %v2253 = vpack.c.b16 %v1929, %v1925
        %v2254 = vpack.c.b16 %v1930, %v1926
        %v2255 = vpack.c.b16 %v1931, %v1927
        %v2256 = vpack.c.b16 %v1936, %v1932
        %v2257 = vpack.c.b16 %v1937, %v1933
        %v2258 = vpack.c.b16 %v1938, %v1934
        %v2259 = vpack.c.b16 %v1939, %v1935
        %v2260 = vpack.c.b16 %v1944, %v1940
        %v2261 = vpack.c.b16 %v1945, %v1941
        %v2262 = vpack.c.b16 %v1946, %v1942
        %v2263 = vpack.c.b16 %v1947, %v1943
        %v2264 = vpack.c.b16 %v1952, %v1948
        %v2265 = vpack.c.b16 %v1953, %v1949
        %v2266 = vpack.c.b16 %v1954, %v1950
        %v2267 = vpack.c.b16 %v1955, %v1951
        %v2268 = vpack.c.b16 %v1960, %v1956
        %v2269 = vpack.c.b16 %v1961, %v1957
        %v2270 = vpack.c.b16 %v1962, %v1958
        %v2271 = vpack.c.b16 %v1963, %v1959
        %v2272 = vpack.c.b16 %v1968, %v1964
        %v2273 = vpack.c.b16 %v1969, %v1965
        %v2274 = vpack.c.b16 %v1970, %v1966
        %v2275 = vpack.c.b16 %v1971, %v1967
        %v2276 = vpack.c.b16 %v1976, %v1972
        %v2277 = vpack.c.b16 %v1977, %v1973
        %v2278 = vpack.c.b16 %v1978, %v1974
        %v2279 = vpack.c.b16 %v1979, %v1975
        %v2280 = vpack.c.b16 %v1984, %v1980
        %v2281 = vpack.c.b16 %v1985, %v1981
        %v2282 = vpack.c.b16 %v1986, %v1982
        %v2283 = vpack.c.b16 %v1987, %v1983
        %v2284 = vpack.c.b16 %v1992, %v1988
        %v2285 = vpack.c.b16 %v1993, %v1989
        %v2286 = vpack.c.b16 %v1994, %v1990
        %v2287 = vpack.c.b16 %v1995, %v1991
        %v2288 = vpack.c.b16 %v2000, %v1996
        %v2289 = vpack.c.b16 %v2001, %v1997
        %v2290 = vpack.c.b16 %v2002, %v1998
        %v2291 = vpack.c.b16 %v2003, %v1999
        %v2292 = vpack.c.b16 %v2008, %v2004
        %v2293 = vpack.c.b16 %v2009, %v2005
        %v2294 = vpack.c.b16 %v2010, %v2006
        %v2295 = vpack.c.b16 %v2011, %v2007
        %v2296 = vpack.c.b16 %v2016, %v2012
        %v2297 = vpack.c.b16 %v2017, %v2013
        %v2298 = vpack.c.b16 %v2018, %v2014
        %v2299 = vpack.c.b16 %v2019, %v2015
        %v2300 = vpack.c.b16 %v2024, %v2020
        %v2301 = vpack.c.b16 %v2025, %v2021
        %v2302 = vpack.c.b16 %v2026, %v2022
        %v2303 = vpack.c.b16 %v2027, %v2023
        %v2304 = vpack.c.b16 %v2032, %v2028
        %v2305 = vpack.c.b16 %v2033, %v2029
        %v2306 = vpack.c.b16 %v2034, %v2030
        %v2307 = vpack.c.b16 %v2035, %v2031
        %v2308 = vpack.c.b16 %v2040, %v2036
        %v2309 = vpack.c.b16 %v2041, %v2037
        %v2310 = vpack.c.b16 %v2042, %v2038
        %v2311 = vpack.c.b16 %v2043, %v2039
        %v2312 = vpack.c.b16 %v2048, %v2044
        %v2313 = vpack.c.b16 %v2049, %v2045
        %v2314 = vpack.c.b16 %v2050, %v2046
        %v2315 = vpack.c.b16 %v2051, %v2047
        %v2316 = vpack.c.b16 %v2056, %v2052
        %v2317 = vpack.c.b16 %v2057, %v2053
        %v2318 = vpack.c.b16 %v2058, %v2054
        %v2319 = vpack.c.b16 %v2059, %v2055
        %v2320 = vpack.c.b16 %v2064, %v2060
        %v2321 = vpack.c.b16 %v2065, %v2061
        %v2322 = vpack.c.b16 %v2066, %v2062
        %v2323 = vpack.c.b16 %v2067, %v2063
        %2580 = vmatprep.subr.bf16.mxu0 %v2069
        %2581 = vmatpush1.bf16.msra.mxu0 %v2068
        %2582 = vmatprep.subr.bf16.mxu0 %v2073
        %2583 = vmatpush1.bf16.msra.mxu0 %v2072
        %2584 = vmatprep.subr.bf16.mxu0 %v2077
        %2585 = vmatpush1.bf16.msra.mxu0 %v2076
        %2586 = vmatprep.subr.bf16.mxu0 %v2081
        %2587 = vmatpush1.bf16.msra.mxu0 %v2080
        %2588 = vmatprep.subr.bf16.mxu0 %v2085
        %2589 = vmatpush1.bf16.msra.mxu0 %v2084
        %2590 = vmatprep.subr.bf16.mxu0 %v2089
        %2591 = vmatpush1.bf16.msra.mxu0 %v2088
        %2592 = vmatprep.subr.bf16.mxu0 %v2093
        %2593 = vmatpush1.bf16.msra.mxu0 %v2092
        %2594 = vmatprep.subr.bf16.mxu0 %v2097
        %2595 = vmatpush1.bf16.msra.mxu0 %v2096
        %2596 = vmatprep.subr.bf16.mxu0 %v2101
        %2597 = vmatpush1.bf16.msra.mxu0 %v2100
        %2598 = vmatprep.subr.bf16.mxu0 %v2105
        %2599 = vmatpush1.bf16.msra.mxu0 %v2104
        %2600 = vmatprep.subr.bf16.mxu0 %v2109
        %2601 = vmatpush1.bf16.msra.mxu0 %v2108
        %2602 = vmatprep.subr.bf16.mxu0 %v2113
        %2603 = vmatpush1.bf16.msra.mxu0 %v2112
        %2604 = vmatprep.subr.bf16.mxu0 %v2117
        %2605 = vmatpush1.bf16.msra.mxu0 %v2116
        %2606 = vmatprep.subr.bf16.mxu0 %v2121
        %2607 = vmatpush1.bf16.msra.mxu0 %v2120
        %2608 = vmatprep.subr.bf16.mxu0 %v2125
        %2609 = vmatpush1.bf16.msra.mxu0 %v2124
        %2610 = vmatprep.subr.bf16.mxu0 %v2129
        %2611 = vmatpush1.bf16.msra.mxu0 %v2128
        %2612 = vmatprep.mubr.bf16.mxu0 %v1015
        %2613 = vmatmul.mubr.bf16.gmra.mrb[0].mxu0 %v1014
        %v2614 = vpop.f32.mrb[0].mxu0
        %v2615 = vadd.f32 %v1283, %v2614
        %v2616 = vpop.f32.mrb[0].mxu0
        %v2617 = vadd.f32 %v1287, %v2616
        %v2618 = vpop.f32.mrb[0].mxu0
        %v2619 = vpop.f32.mrb[0].mxu0
        %2620 = vdwg.mxu0
        %2621 = vmatprep.subr.bf16.mxu0 %v2133
        %2622 = vmatpush1.bf16.msra.mxu0 %v2132
        %2623 = vmatprep.subr.bf16.mxu0 %v2137
        %2624 = vmatpush1.bf16.msra.mxu0 %v2136
        %2625 = vmatprep.subr.bf16.mxu0 %v2141
        %2626 = vmatpush1.bf16.msra.mxu0 %v2140
        %2627 = vmatprep.subr.bf16.mxu0 %v2145
        %2628 = vmatpush1.bf16.msra.mxu0 %v2144
        %2629 = vmatprep.subr.bf16.mxu0 %v2149
        %2630 = vmatpush1.bf16.msra.mxu0 %v2148
        %2631 = vmatprep.subr.bf16.mxu0 %v2153
        %2632 = vmatpush1.bf16.msra.mxu0 %v2152
        %2633 = vmatprep.subr.bf16.mxu0 %v2157
        %2634 = vmatpush1.bf16.msra.mxu0 %v2156
        %2635 = vmatprep.subr.bf16.mxu0 %v2161
        %2636 = vmatpush1.bf16.msra.mxu0 %v2160
        %2637 = vmatprep.subr.bf16.mxu0 %v2165
        %2638 = vmatpush1.bf16.msra.mxu0 %v2164
        %2639 = vmatprep.subr.bf16.mxu0 %v2169
        %2640 = vmatpush1.bf16.msra.mxu0 %v2168
        %2641 = vmatprep.subr.bf16.mxu0 %v2173
        %2642 = vmatpush1.bf16.msra.mxu0 %v2172
        %2643 = vmatprep.subr.bf16.mxu0 %v2177
        %2644 = vmatpush1.bf16.msra.mxu0 %v2176
        %2645 = vmatprep.subr.bf16.mxu0 %v2181
        %2646 = vmatpush1.bf16.msra.mxu0 %v2180
        %2647 = vmatprep.subr.bf16.mxu0 %v2185
        %2648 = vmatpush1.bf16.msra.mxu0 %v2184
        %2649 = vmatprep.subr.bf16.mxu0 %v2189
        %2650 = vmatpush1.bf16.msra.mxu0 %v2188
        %2651 = vmatprep.subr.bf16.mxu0 %v2193
        %2652 = vmatpush1.bf16.msra.mxu0 %v2192
        %2653 = vmatprep.mubr.bf16.mxu0 %v1017
        %2654 = vmatmul.mubr.bf16.gmra.mrb[0].mxu0 %v1016
        %v2655 = vpop.f32.mrb[0].mxu0
        %v2656 = vadd.f32 %v2615, %v2655
        %v2657 = vpop.f32.mrb[0].mxu0
        %v2658 = vadd.f32 %v2617, %v2657
        %v2659 = vpop.f32.mrb[0].mxu0
        %v2660 = vpop.f32.mrb[0].mxu0
        %2661 = vdwg.mxu0
        %2662 = vmatprep.subr.bf16.mxu0 %v2197
        %2663 = vmatpush1.bf16.msra.mxu0 %v2196
        %2664 = vmatprep.subr.bf16.mxu0 %v2201
        %2665 = vmatpush1.bf16.msra.mxu0 %v2200
        %2666 = vmatprep.subr.bf16.mxu0 %v2205
        %2667 = vmatpush1.bf16.msra.mxu0 %v2204
        %2668 = vmatprep.subr.bf16.mxu0 %v2209
        %2669 = vmatpush1.bf16.msra.mxu0 %v2208
        %2670 = vmatprep.subr.bf16.mxu0 %v2213
        %2671 = vmatpush1.bf16.msra.mxu0 %v2212
        %2672 = vmatprep.subr.bf16.mxu0 %v2217
        %2673 = vmatpush1.bf16.msra.mxu0 %v2216
        %2674 = vmatprep.subr.bf16.mxu0 %v2221
        %2675 = vmatpush1.bf16.msra.mxu0 %v2220
        %2676 = vmatprep.subr.bf16.mxu0 %v2225
        %2677 = vmatpush1.bf16.msra.mxu0 %v2224
        %2678 = vmatprep.subr.bf16.mxu0 %v2229
        %2679 = vmatpush1.bf16.msra.mxu0 %v2228
        %2680 = vmatprep.subr.bf16.mxu0 %v2233
        %2681 = vmatpush1.bf16.msra.mxu0 %v2232
        %2682 = vmatprep.subr.bf16.mxu0 %v2237
        %2683 = vmatpush1.bf16.msra.mxu0 %v2236
        %2684 = vmatprep.subr.bf16.mxu0 %v2241
        %2685 = vmatpush1.bf16.msra.mxu0 %v2240
        %2686 = vmatprep.subr.bf16.mxu0 %v2245
        %2687 = vmatpush1.bf16.msra.mxu0 %v2244
        %2688 = vmatprep.subr.bf16.mxu0 %v2249
        %2689 = vmatpush1.bf16.msra.mxu0 %v2248
        %2690 = vmatprep.subr.bf16.mxu0 %v2253
        %2691 = vmatpush1.bf16.msra.mxu0 %v2252
        %2692 = vmatprep.subr.bf16.mxu0 %v2257
        %2693 = vmatpush1.bf16.msra.mxu0 %v2256
        %2694 = vmatprep.mubr.bf16.mxu0 %v1019
        %2695 = vmatmul.mubr.bf16.gmra.mrb[0].mxu0 %v1018
        %v2696 = vpop.f32.mrb[0].mxu0
        %v2697 = vadd.f32 %v2656, %v2696
        %v2698 = vpop.f32.mrb[0].mxu0
        %v2699 = vadd.f32 %v2658, %v2698
        %v2700 = vpop.f32.mrb[0].mxu0
        %v2701 = vpop.f32.mrb[0].mxu0
        %2702 = vdwg.mxu0
        %2703 = vmatprep.subr.bf16.mxu0 %v2261
        %2704 = vmatpush1.bf16.msra.mxu0 %v2260
        %2705 = vmatprep.subr.bf16.mxu0 %v2265
        %2706 = vmatpush1.bf16.msra.mxu0 %v2264
        %2707 = vmatprep.subr.bf16.mxu0 %v2269
        %2708 = vmatpush1.bf16.msra.mxu0 %v2268
        %2709 = vmatprep.subr.bf16.mxu0 %v2273
        %2710 = vmatpush1.bf16.msra.mxu0 %v2272
        %2711 = vmatprep.subr.bf16.mxu0 %v2277
        %2712 = vmatpush1.bf16.msra.mxu0 %v2276
        %2713 = vmatprep.subr.bf16.mxu0 %v2281
        %2714 = vmatpush1.bf16.msra.mxu0 %v2280
        %2715 = vmatprep.subr.bf16.mxu0 %v2285
        %2716 = vmatpush1.bf16.msra.mxu0 %v2284
        %2717 = vmatprep.subr.bf16.mxu0 %v2289
        %2718 = vmatpush1.bf16.msra.mxu0 %v2288
        %2719 = vmatprep.subr.bf16.mxu0 %v2293
        %2720 = vmatpush1.bf16.msra.mxu0 %v2292
        %2721 = vmatprep.subr.bf16.mxu0 %v2297
        %2722 = vmatpush1.bf16.msra.mxu0 %v2296
        %2723 = vmatprep.subr.bf16.mxu0 %v2301
        %2724 = vmatpush1.bf16.msra.mxu0 %v2300
        %2725 = vmatprep.subr.bf16.mxu0 %v2305
        %2726 = vmatpush1.bf16.msra.mxu0 %v2304
        %2727 = vmatprep.subr.bf16.mxu0 %v2309
        %2728 = vmatpush1.bf16.msra.mxu0 %v2308
        %2729 = vmatprep.subr.bf16.mxu0 %v2313
        %2730 = vmatpush1.bf16.msra.mxu0 %v2312
        %2731 = vmatprep.subr.bf16.mxu0 %v2317
        %2732 = vmatpush1.bf16.msra.mxu0 %v2316
        %2733 = vmatprep.subr.bf16.mxu0 %v2321
        %2734 = vmatpush1.bf16.msra.mxu0 %v2320
        %2735 = vmatprep.mubr.bf16.mxu0 %v1021
        %2736 = vmatmul.mubr.bf16.gmra.mrb[0].mxu0 %v1020
        %v2737 = vpop.f32.mrb[0].mxu0
        %v2738 = vadd.f32 %v2697, %v2737
        %v2739 = vpop.f32.mrb[0].mxu0
        %v2740 = vadd.f32 %v2699, %v2739
        %v2741 = vpop.f32.mrb[0].mxu0
        %v2742 = vpop.f32.mrb[0].mxu0
        %2743 = vdwg.mxu0
        %2744 = vmatprep.subr.bf16.mxu0 %v2071
        %2745 = vmatpush1.bf16.msra.mxu0 %v2070
        %2746 = vmatprep.subr.bf16.mxu0 %v2075
        %2747 = vmatpush1.bf16.msra.mxu0 %v2074
        %2748 = vmatprep.subr.bf16.mxu0 %v2079
        %2749 = vmatpush1.bf16.msra.mxu0 %v2078
        %2750 = vmatprep.subr.bf16.mxu0 %v2083
        %2751 = vmatpush1.bf16.msra.mxu0 %v2082
        %2752 = vmatprep.subr.bf16.mxu0 %v2087
        %2753 = vmatpush1.bf16.msra.mxu0 %v2086
        %2754 = vmatprep.subr.bf16.mxu0 %v2091
        %2755 = vmatpush1.bf16.msra.mxu0 %v2090
        %2756 = vmatprep.subr.bf16.mxu0 %v2095
        %2757 = vmatpush1.bf16.msra.mxu0 %v2094
        %2758 = vmatprep.subr.bf16.mxu0 %v2099
        %2759 = vmatpush1.bf16.msra.mxu0 %v2098
        %2760 = vmatprep.subr.bf16.mxu0 %v2103
        %2761 = vmatpush1.bf16.msra.mxu0 %v2102
        %2762 = vmatprep.subr.bf16.mxu0 %v2107
        %2763 = vmatpush1.bf16.msra.mxu0 %v2106
        %2764 = vmatprep.subr.bf16.mxu0 %v2111
        %2765 = vmatpush1.bf16.msra.mxu0 %v2110
        %2766 = vmatprep.subr.bf16.mxu0 %v2115
        %2767 = vmatpush1.bf16.msra.mxu0 %v2114
        %2768 = vmatprep.subr.bf16.mxu0 %v2119
        %2769 = vmatpush1.bf16.msra.mxu0 %v2118
        %2770 = vmatprep.subr.bf16.mxu0 %v2123
        %2771 = vmatpush1.bf16.msra.mxu0 %v2122
        %2772 = vmatprep.subr.bf16.mxu0 %v2127
        %2773 = vmatpush1.bf16.msra.mxu0 %v2126
        %2774 = vmatprep.subr.bf16.mxu0 %v2131
        %2775 = vmatpush1.bf16.msra.mxu0 %v2130
        %2776 = vmatprep.mubr.bf16.mxu0 %v1015
        %2777 = vmatmul.mubr.bf16.gmra.mrb[0].mxu0 %v1014
        %v2778 = vpop.f32.mrb[0].mxu0
        %v2779 = vadd.f32 %v1291, %v2778
        %v2780 = vpop.f32.mrb[0].mxu0
        %v2781 = vadd.f32 %v1295, %v2780
        %v2782 = vpop.f32.mrb[0].mxu0
        %v2783 = vpop.f32.mrb[0].mxu0
        %2784 = vdwg.mxu0
        %2785 = vmatprep.subr.bf16.mxu0 %v2135
        %2786 = vmatpush1.bf16.msra.mxu0 %v2134
        %2787 = vmatprep.subr.bf16.mxu0 %v2139
        %2788 = vmatpush1.bf16.msra.mxu0 %v2138
        %2789 = vmatprep.subr.bf16.mxu0 %v2143
        %2790 = vmatpush1.bf16.msra.mxu0 %v2142
        %2791 = vmatprep.subr.bf16.mxu0 %v2147
        %2792 = vmatpush1.bf16.msra.mxu0 %v2146
        %2793 = vmatprep.subr.bf16.mxu0 %v2151
        %2794 = vmatpush1.bf16.msra.mxu0 %v2150
        %2795 = vmatprep.subr.bf16.mxu0 %v2155
        %2796 = vmatpush1.bf16.msra.mxu0 %v2154
        %2797 = vmatprep.subr.bf16.mxu0 %v2159
        %2798 = vmatpush1.bf16.msra.mxu0 %v2158
        %2799 = vmatprep.subr.bf16.mxu0 %v2163
        %2800 = vmatpush1.bf16.msra.mxu0 %v2162
        %2801 = vmatprep.subr.bf16.mxu0 %v2167
        %2802 = vmatpush1.bf16.msra.mxu0 %v2166
        %2803 = vmatprep.subr.bf16.mxu0 %v2171
        %2804 = vmatpush1.bf16.msra.mxu0 %v2170
        %2805 = vmatprep.subr.bf16.mxu0 %v2175
        %2806 = vmatpush1.bf16.msra.mxu0 %v2174
        %2807 = vmatprep.subr.bf16.mxu0 %v2179
        %2808 = vmatpush1.bf16.msra.mxu0 %v2178
        %2809 = vmatprep.subr.bf16.mxu0 %v2183
        %2810 = vmatpush1.bf16.msra.mxu0 %v2182
        %2811 = vmatprep.subr.bf16.mxu0 %v2187
        %2812 = vmatpush1.bf16.msra.mxu0 %v2186
        %2813 = vmatprep.subr.bf16.mxu0 %v2191
        %2814 = vmatpush1.bf16.msra.mxu0 %v2190
        %2815 = vmatprep.subr.bf16.mxu0 %v2195
        %2816 = vmatpush1.bf16.msra.mxu0 %v2194
        %2817 = vmatprep.mubr.bf16.mxu0 %v1017
        %2818 = vmatmul.mubr.bf16.gmra.mrb[0].mxu0 %v1016
        %v2819 = vpop.f32.mrb[0].mxu0
        %v2820 = vadd.f32 %v2779, %v2819
        %v2821 = vpop.f32.mrb[0].mxu0
        %v2822 = vadd.f32 %v2781, %v2821
        %v2823 = vpop.f32.mrb[0].mxu0
        %v2824 = vpop.f32.mrb[0].mxu0
        %2825 = vdwg.mxu0
        %2826 = vmatprep.subr.bf16.mxu0 %v2199
        %2827 = vmatpush1.bf16.msra.mxu0 %v2198
        %2828 = vmatprep.subr.bf16.mxu0 %v2203
        %2829 = vmatpush1.bf16.msra.mxu0 %v2202
        %2830 = vmatprep.subr.bf16.mxu0 %v2207
        %2831 = vmatpush1.bf16.msra.mxu0 %v2206
        %2832 = vmatprep.subr.bf16.mxu0 %v2211
        %2833 = vmatpush1.bf16.msra.mxu0 %v2210
        %2834 = vmatprep.subr.bf16.mxu0 %v2215
        %2835 = vmatpush1.bf16.msra.mxu0 %v2214
        %2836 = vmatprep.subr.bf16.mxu0 %v2219
        %2837 = vmatpush1.bf16.msra.mxu0 %v2218
        %2838 = vmatprep.subr.bf16.mxu0 %v2223
        %2839 = vmatpush1.bf16.msra.mxu0 %v2222
        %2840 = vmatprep.subr.bf16.mxu0 %v2227
        %2841 = vmatpush1.bf16.msra.mxu0 %v2226
        %2842 = vmatprep.subr.bf16.mxu0 %v2231
        %2843 = vmatpush1.bf16.msra.mxu0 %v2230
        %2844 = vmatprep.subr.bf16.mxu0 %v2235
        %2845 = vmatpush1.bf16.msra.mxu0 %v2234
        %2846 = vmatprep.subr.bf16.mxu0 %v2239
        %2847 = vmatpush1.bf16.msra.mxu0 %v2238
        %2848 = vmatprep.subr.bf16.mxu0 %v2243
        %2849 = vmatpush1.bf16.msra.mxu0 %v2242
        %2850 = vmatprep.subr.bf16.mxu0 %v2247
        %2851 = vmatpush1.bf16.msra.mxu0 %v2246
        %2852 = vmatprep.subr.bf16.mxu0 %v2251
        %2853 = vmatpush1.bf16.msra.mxu0 %v2250
        %2854 = vmatprep.subr.bf16.mxu0 %v2255
        %2855 = vmatpush1.bf16.msra.mxu0 %v2254
        %2856 = vmatprep.subr.bf16.mxu0 %v2259
        %2857 = vmatpush1.bf16.msra.mxu0 %v2258
        %2858 = vmatprep.mubr.bf16.mxu0 %v1019
        %2859 = vmatmul.mubr.bf16.gmra.mrb[0].mxu0 %v1018
        %v2860 = vpop.f32.mrb[0].mxu0
        %v2861 = vadd.f32 %v2820, %v2860
        %v2862 = vpop.f32.mrb[0].mxu0
        %v2863 = vadd.f32 %v2822, %v2862
        %v2864 = vpop.f32.mrb[0].mxu0
        %v2865 = vpop.f32.mrb[0].mxu0
        %2866 = vdwg.mxu0
        %2867 = vmatprep.subr.bf16.mxu0 %v2263
        %2868 = vmatpush1.bf16.msra.mxu0 %v2262
        %2869 = vmatprep.subr.bf16.mxu0 %v2267
        %2870 = vmatpush1.bf16.msra.mxu0 %v2266
        %2871 = vmatprep.subr.bf16.mxu0 %v2271
        %2872 = vmatpush1.bf16.msra.mxu0 %v2270
        %2873 = vmatprep.subr.bf16.mxu0 %v2275
        %2874 = vmatpush1.bf16.msra.mxu0 %v2274
        %2875 = vmatprep.subr.bf16.mxu0 %v2279
        %2876 = vmatpush1.bf16.msra.mxu0 %v2278
        %2877 = vmatprep.subr.bf16.mxu0 %v2283
        %2878 = vmatpush1.bf16.msra.mxu0 %v2282
        %2879 = vmatprep.subr.bf16.mxu0 %v2287
        %2880 = vmatpush1.bf16.msra.mxu0 %v2286
        %2881 = vmatprep.subr.bf16.mxu0 %v2291
        %2882 = vmatpush1.bf16.msra.mxu0 %v2290
        %2883 = vmatprep.subr.bf16.mxu0 %v2295
        %2884 = vmatpush1.bf16.msra.mxu0 %v2294
        %2885 = vmatprep.subr.bf16.mxu0 %v2299
        %2886 = vmatpush1.bf16.msra.mxu0 %v2298
        %2887 = vmatprep.subr.bf16.mxu0 %v2303
        %2888 = vmatpush1.bf16.msra.mxu0 %v2302
        %2889 = vmatprep.subr.bf16.mxu0 %v2307
        %2890 = vmatpush1.bf16.msra.mxu0 %v2306
        %2891 = vmatprep.subr.bf16.mxu0 %v2311
        %2892 = vmatpush1.bf16.msra.mxu0 %v2310
        %2893 = vmatprep.subr.bf16.mxu0 %v2315
        %2894 = vmatpush1.bf16.msra.mxu0 %v2314
        %2895 = vmatprep.subr.bf16.mxu0 %v2319
        %2896 = vmatpush1.bf16.msra.mxu0 %v2318
        %2897 = vmatprep.subr.bf16.mxu0 %v2323
        %2898 = vmatpush1.bf16.msra.mxu0 %v2322
        %2899 = vmatprep.mubr.bf16.mxu0 %v1021
        %2900 = vmatmul.mubr.bf16.gmra.mrb[0].mxu0 %v1020
        %v2901 = vpop.f32.mrb[0].mxu0
        %v2902 = vadd.f32 %v2861, %v2901
        %v2903 = vpop.f32.mrb[0].mxu0
        %v2904 = vadd.f32 %v2863, %v2903
        %v2905 = vpop.f32.mrb[0].mxu0
        %v2906 = vpop.f32.mrb[0].mxu0
        %2907 = vdwg.mxu0
        %v2908 = vrot.slane %v2738, 4
        %v2909 = vadd.f32 %v2738, %v2908
        %v2910 = vrot.slane %v2909, 2
        %v2911 = vadd.f32 %v2909, %v2910
        %v2912 = vrot.slane %v2911, 1
        %v2913 = vadd.f32 %v2911, %v2912
        %v2914 = vrot.slane %v2740, 4
        %v2915 = vadd.f32 %v2740, %v2914
        %v2916 = vrot.slane %v2915, 2
        %v2917 = vadd.f32 %v2915, %v2916
        %v2918 = vrot.slane %v2917, 1
        %v2919 = vadd.f32 %v2917, %v2918
        %v2920 = vrot.slane %v2902, 4
        %v2921 = vadd.f32 %v2902, %v2920
        %v2922 = vrot.slane %v2921, 2
        %v2923 = vadd.f32 %v2921, %v2922
        %v2924 = vrot.slane %v2923, 1
        %v2925 = vadd.f32 %v2923, %v2924
        %v2926 = vrot.slane %v2904, 4
        %v2927 = vadd.f32 %v2904, %v2926
        %v2928 = vrot.slane %v2927, 2
        %v2929 = vadd.f32 %v2927, %v2928
        %v2930 = vrot.slane %v2929, 1
        %v2931 = vadd.f32 %v2929, %v2930
        %v2932 = vmul.f32 %v2913, 0.125
        %v2933 = vmul.f32 %v2919, 0.125
        %v2934 = vmul.f32 %v2925, 0.125
        %v2935 = vmul.f32 %v2931, 0.125
        %v2936 = vmul.f32 %v2738, %v2738
        %v2937 = vmul.f32 %v2740, %v2740
        %v2938 = vmul.f32 %v2902, %v2902
        %v2939 = vmul.f32 %v2904, %v2904
        %v2940 = vrot.slane %v2936, 4
        %v2941 = vadd.f32 %v2936, %v2940
        %v2942 = vrot.slane %v2941, 2
        %v2943 = vadd.f32 %v2941, %v2942
        %v2944 = vrot.slane %v2943, 1
        %v2945 = vadd.f32 %v2943, %v2944
        %v2946 = vrot.slane %v2937, 4
        %v2947 = vadd.f32 %v2937, %v2946
        %v2948 = vrot.slane %v2947, 2
        %v2949 = vadd.f32 %v2947, %v2948
        %v2950 = vrot.slane %v2949, 1
        %v2951 = vadd.f32 %v2949, %v2950
        %v2952 = vrot.slane %v2938, 4
        %v2953 = vadd.f32 %v2938, %v2952
        %v2954 = vrot.slane %v2953, 2
        %v2955 = vadd.f32 %v2953, %v2954
        %v2956 = vrot.slane %v2955, 1
        %v2957 = vadd.f32 %v2955, %v2956
        %v2958 = vrot.slane %v2939, 4
        %v2959 = vadd.f32 %v2939, %v2958
        %v2960 = vrot.slane %v2959, 2
        %v2961 = vadd.f32 %v2959, %v2960
        %v2962 = vrot.slane %v2961, 1
        %v2963 = vadd.f32 %v2961, %v2962
        %v2964 = vmul.f32 %v2945, 0.125
        %v2965 = vmul.f32 %v2951, 0.125
        %v2966 = vmul.f32 %v2957, 0.125
        %v2967 = vmul.f32 %v2963, 0.125
        %v2968 = vmul.f32 %v2932, %v2932
        %v2969 = vmul.f32 %v2933, %v2933
        %v2970 = vmul.f32 %v2934, %v2934
        %v2971 = vmul.f32 %v2935, %v2935
        %v2972 = vsub.f32 %v2964, %v2968
        %v2973 = vsub.f32 %v2965, %v2969
        %v2974 = vsub.f32 %v2966, %v2970
        %v2975 = vsub.f32 %v2967, %v2971
        %v2976 = vmax.f32 %v2972, 0.0
        %v2977 = vmax.f32 %v2973, 0.0
        %v2978 = vmax.f32 %v2974, 0.0
        %v2979 = vmax.f32 %v2975, 0.0
        %s2980 = scalar_lea.vmem %s339, 1
        %v2981 = vld [vmem:[%s2980] ss:$4 sm:$0xf]
        %v2982 = vadd.f32 %v2976, 1e-05
        %v2983 = vadd.f32 %v2977, 1e-05
        %v2984 = vadd.f32 %v2978, 1e-05
        %v2985 = vadd.f32 %v2979, 1e-05
        %v2986 = vrsqrt.pop %v2982
        %v2987 = vrsqrt.pop %v2983
        %v2988 = vrsqrt.pop %v2984
        %v2989 = vrsqrt.pop %v2985
        %v2994 = vcombine.low %v2986, %v2987
        %v2995 = vcombine.low %v2988, %v2989
        %v2997 = vunpack.c.l.s4 1966171168
        %v2998 = vunpack.c.0.s8 %v2997
        %v2999 = vlaneseq
        %v3000 = vshrl.u32 %v2999, 7
        %v3001 = vsub.s32 %v2998, %v3000
        %v3002 = vrot.slane %v2994, %v3001
        %v3004 = vunpack.c.l.s4 1966171168
        %v3005 = vunpack.c.0.s8 %v3004
        %v3006 = vlaneseq
        %v3007 = vshrl.u32 %v3006, 7
        %v3008 = vsub.s32 %v3005, %v3007
        %v3009 = vrot.slane %v2995, %v3008
        %v3010 = vcombine.low %v3002, %v3009
        %v3012 = vunpack.c.l.s4 1966171168
        %v3013 = vunpack.c.0.s8 %v3012
        %v3014 = vlaneseq
        %v3015 = vshrl.u32 %v3014, 7
        %v3016 = vsub.s32 %v3013, %v3015
        %v3017 = vrot.slane %v3010, %v3016
        %v3019 = vmul.f32 %v2981, %v3017
        %s3020 = scalar_lea.vmem %s339, 2
        %v3021 = vld [vmem:[%s3020] ss:$4 sm:$0xf]
        %v3023 = vlaneseq
        %v3024 = vshrl.u32 %v3023, 7
        %v3025 = vsub.s32 0, %v3024
        %v3026 = vrot.slane %v3019, %v3025
        %v3027 = vlaneseq
        %v3028 = vshrl.u32 %v3027, 7
        %v3029 = vsub.s32 1, %v3028
        %v3030 = vrot.slane %v3019, %v3029
        %v3031 = vlaneseq
        %v3032 = vshrl.u32 %v3031, 7
        %v3033 = vsub.s32 2, %v3032
        %v3034 = vrot.slane %v3019, %v3033
        %v3035 = vlaneseq
        %v3036 = vshrl.u32 %v3035, 7
        %v3037 = vsub.s32 3, %v3036
        %v3038 = vrot.slane %v3019, %v3037
        %v3043 = vmul.f32 %v2932, %v3026
        %v3044 = vmul.f32 %v2933, %v3030
        %v3045 = vmul.f32 %v2934, %v3034
        %v3046 = vmul.f32 %v2935, %v3038
        %v3051 = vcombine.low %v3043, %v3044
        %v3052 = vcombine.low %v3045, %v3046
        %v3054 = vunpack.c.l.s4 1966171168
        %v3055 = vunpack.c.0.s8 %v3054
        %v3056 = vlaneseq
        %v3057 = vshrl.u32 %v3056, 7
        %v3058 = vsub.s32 %v3055, %v3057
        %v3059 = vrot.slane %v3051, %v3058
        %v3061 = vunpack.c.l.s4 1966171168
        %v3062 = vunpack.c.0.s8 %v3061
        %v3063 = vlaneseq
        %v3064 = vshrl.u32 %v3063, 7
        %v3065 = vsub.s32 %v3062, %v3064
        %v3066 = vrot.slane %v3052, %v3065
        %v3067 = vcombine.low %v3059, %v3066
        %v3069 = vunpack.c.l.s4 1966171168
        %v3070 = vunpack.c.0.s8 %v3069
        %v3071 = vlaneseq
        %v3072 = vshrl.u32 %v3071, 7
        %v3073 = vsub.s32 %v3070, %v3072
        %v3074 = vrot.slane %v3067, %v3073
        %v3076 = vsub.f32 %v3021, %v3074
        %v3077 = vmul.f32 %v2738, %v3026
        %v3078 = vmul.f32 %v2740, %v3030
        %v3079 = vmul.f32 %v2902, %v3034
        %v3080 = vmul.f32 %v2904, %v3038
        %v3082 = vlaneseq
        %v3083 = vshrl.u32 %v3082, 7
        %v3084 = vsub.s32 0, %v3083
        %v3085 = vrot.slane %v3076, %v3084
        %v3086 = vlaneseq
        %v3087 = vshrl.u32 %v3086, 7
        %v3088 = vsub.s32 1, %v3087
        %v3089 = vrot.slane %v3076, %v3088
        %v3090 = vlaneseq
        %v3091 = vshrl.u32 %v3090, 7
        %v3092 = vsub.s32 2, %v3091
        %v3093 = vrot.slane %v3076, %v3092
        %v3094 = vlaneseq
        %v3095 = vshrl.u32 %v3094, 7
        %v3096 = vsub.s32 3, %v3095
        %v3097 = vrot.slane %v3076, %v3096
        %v3102 = vadd.f32 %v3077, %v3085
        %v3103 = vadd.f32 %v3078, %v3089
        %v3104 = vadd.f32 %v3079, %v3093
        %v3105 = vadd.f32 %v3080, %v3097
        %v3106 = vmax.f32 %v3102, 0.0
        %v3107 = vmax.f32 %v3103, 0.0
        %v3108 = vmax.f32 %v3104, 0.0
        %v3109 = vmax.f32 %v3105, 0.0
        %v3110 = vmul.f32 %v3106, %v3106
        %v3111 = vmul.f32 %v3107, %v3107
        %v3112 = vmul.f32 %v3108, %v3108
        %v3113 = vmul.f32 %v3109, %v3109
        %v3114 = vadd.f32 %v3110, %v3111
        %v3115 = vadd.f32 %v3114, %v3112
        %v3116 = vadd.f32 %v3115, %v3113
        %3117 = vadd.xlane.f32.xlu0 %v3116
        %v3118 = vpop.xlane.xlu0 %3117
        %v3119 = vmax.f32 %v3118, 1e-24
        %v3120 = vrsqrt.pop %v3119
        %v3121 = vmul.f32 %v3106, %v3120
        %v3122 = vmul.f32 %v3107, %v3120
        %v3123 = vmul.f32 %v3108, %v3120
        %v3124 = vmul.f32 %v3109, %v3120
        %3125 = vst [vmem:[%s324] sm:$0xff] %v3121
        %3126 = vst [vmem:[%s324 + $0x8] sm:$0xff] %v3122
        %3127 = vst [vmem:[%s324 + $0x10] sm:$0xff] %v3123
        %3128 = vst [vmem:[%s324 + $0x18] sm:$0xff] %v3124
        %s3129 = sand.u32 %s163, 1
        %s3130 = scalar_lea.sflag [#allocation4], %s3129
        %s3131 = sand.u32 %s163, 1
        %s3132 = smul.addr %s3131, 32
        %s3133 = scalar_lea.vmem [#allocation7], %s3132
        // Predicated region
        $region49: #{tpu_custom_call.1} parent=39 // pred_check
          %p3134 = pneg %p173
        $region50: #{tpu_custom_call.1} parent=39 // pred_check_branch
          %3136 = sbr.rel (%p3134) target = $region52
        $region51: #{tpu_custom_call.1} parent=39 // pred_region
          %s3138 = ssub.s32 512, 512
          %3139 = vsyncadd %s3130, %s3138
          %s3140 = smul.addr %s25, 4
          %s3141 = smul.addr %s3140, 128
          %s3142 = scalar_lea.hbm %s5, %s3141
          %s3144 = sshll.u32 %s3133, 4
          %s3145 = int_to_ptr.vmem [resolvable:$true] %s3144
          %3147 = dma.vmem_to_hbm [thread:$0]  %s3145, 512, %s3142, %s3130
        $region52: #{tpu_custom_call.1} parent=39 // pred_fallthru
          _
      $region40: #{tpu_custom_call.1} parent=5 // pred_fallthru
        _
      %p3148 = scmp.le.s32.totalorder 2, %s20
      // Predicated region
      $region53: #{tpu_custom_call.1} parent=5 // pred_check
        %p3149 = pneg %p3148
      $region54: #{tpu_custom_call.1} parent=5 // pred_check_branch
        %3151 = sbr.rel (%p3149) target = $region56
      $region55: #{tpu_custom_call.1} parent=5 // pred_region
        %s3152 = ssub.s32 %s20, 2
        // Predicated region
        $region57: #{tpu_custom_call.1} parent=55 // pred_check
          %p3153 = pneg %p179
        $region58: #{tpu_custom_call.1} parent=55 // pred_check_branch
          %3155 = sbr.rel (%p3153) target = $region60
        $region59: #{tpu_custom_call.1} parent=55 // pred_region
          %s3156 = sand.u32 %s164, 1
          %s3157 = scalar_lea.sflag [#allocation4], %s3156
          %s3158 = sand.u32 %s164, 1
          %s3159 = smul.addr %s3158, 32
          %s3160 = scalar_lea.vmem [#allocation7], %s3159
          %3161 = dma.done %s3157, 512
        $region60: #{tpu_custom_call.1} parent=55 // pred_fallthru
          _
      $region56: #{tpu_custom_call.1} parent=5 // pred_fallthru
        _
    $region6: #{tpu_custom_call.1} parent=1 // loop_footer
      %s24 = sadd.s32 1, %s20
    $region7: #{tpu_custom_call.1} parent=1 // loop_footer_branch
      %19 = sbr.rel target = $region3
    $region8: #{tpu_custom_call.1} parent=1 // loop_exit
      _
    %3162 = vsyncpa [#allocation3], 1
    %s3163 = scalar_lea.sflag [#allocation3], 1
    %3164 = vsyncpa %s3163, 1
    %3165 = vsyncpa [#allocation6], 1
    %s3166 = scalar_lea.sflag [#allocation6], 1
    %3167 = vsyncpa %s3166, 1
    %3168 = vsyncpa [#allocation4], 1
    %s3169 = scalar_lea.sflag [#allocation4], 1
    %3170 = vsyncpa %s3169, 1

</llo_original>
